<compile_context>
chip_gen: v7x
topology: tpu7x:2x2x1
jax: 0.10.0
libtpu: 0.0.40
codegen_flags: <defaults>
</compile_context>

<pallas_src>
import functools
import math

import jax
import jax.numpy as jnp
from jax import lax
from jax.experimental import pallas as pl
from jax.experimental.pallas import tpu as pltpu


def mha_kernel(q_ref, k_ref, v_ref, wq_ref, wk_ref, wv_ref, wo_ref, o_ref, *,
               num_heads, d_k, d_v, seq_len, batch_tile, mask, approx_recip):
    # Refs for one grid step (batch_tile batches, rows = batch_tile * seq_len):
    #   q_ref/k_ref/v_ref : (rows, d_model)     compute dtype
    #   wq_ref/wk_ref     : (d_model, H*d_k)    compute dtype (head-fused)
    #   wv_ref            : (d_model, H*d_v)    compute dtype (head-fused)
    #   wo_ref            : (H*d_v, d_model)    compute dtype
    #   o_ref             : (rows, d_model)     float32 output
    cdt = q_ref.dtype
    f32 = jnp.float32
    scale = f32(1.0 / math.sqrt(seq_len))  # module quirk: 1/sqrt(S)

    # Head-fused projections: one wide matmul per Q/K/V, f32 accumulation.
    # The softmax scale is folded into the Q projection here, in f32, before
    # the compute-dtype cast (scale > 0, so the -inf mask below is unaffected).
    qp = (jnp.dot(q_ref[...], wq_ref[...], preferred_element_type=f32)
          * scale).astype(cdt)
    kp = jnp.dot(k_ref[...], wk_ref[...],
                 preferred_element_type=f32).astype(cdt)
    vp = jnp.dot(v_ref[...], wv_ref[...],
                 preferred_element_type=f32).astype(cdt)

    if mask:
        # Hoisted out of the loops; the diagonal is kept, so no row is fully
        # masked (no NaN risk from exp(-inf - (-inf))).
        row = lax.broadcasted_iota(jnp.int32, (seq_len, seq_len), 0)
        col = lax.broadcasted_iota(jnp.int32, (seq_len, seq_len), 1)
        keep = col <= row

    # Small static batch_tile / head counts -> unrolled.  Per-head results are
    # kept in registers (compute dtype) and concatenated; no VMEM scratch
    # round-trip before the single deferred W_O matmul.
    batch_rows = []
    for b in range(batch_tile):
        r0 = b * seq_len
        heads = []
        for h in range(num_heads):
            q_h = qp[r0:r0 + seq_len, h * d_k:(h + 1) * d_k]
            k_h = kp[r0:r0 + seq_len, h * d_k:(h + 1) * d_k]
            v_h = vp[r0:r0 + seq_len, h * d_v:(h + 1) * d_v]

            # q_h @ k_h.T without materializing a transpose (contract last dims).
            s = lax.dot_general(q_h, k_h, (((1,), (1,)), ((), ())),
                                preferred_element_type=f32)
            if mask:
                s = jnp.where(keep, s, -jnp.inf)

            m = jnp.max(s, axis=-1, keepdims=True)
            e = jnp.exp(s - m)
            denom = jnp.sum(e, axis=-1, keepdims=True)

            # Deferred normalization: scale the (S, d_v) result instead of the
            # (S, S) probability matrix.
            head = (jnp.dot(e.astype(cdt), v_h, preferred_element_type=f32)
                    * pl.reciprocal(denom, approx=approx_recip))
            heads.append(head.astype(cdt))
        batch_rows.append(jnp.concatenate(heads, axis=-1))

    concat = jnp.concatenate(batch_rows, axis=0)  # (rows, H*d_v), compute dtype

    # Single deferred output projection over the concatenated heads.
    o_ref[...] = jnp.dot(concat, wo_ref[...],
                         preferred_element_type=f32).astype(o_ref.dtype)


def multihead_attention(Q, K, V, W_Q, W_K, W_V, W_O, mask=False,
                        compute_dtype=jnp.bfloat16, batch_tile=None):
    B, S, d_model = Q.shape
    H, _, d_k = W_Q.shape
    d_v = W_V.shape[-1]
    assert W_O.shape == (H * d_v, d_model)

    cdt = jnp.dtype(compute_dtype)

    # Fuse per-head projection weights along the output dim (head-major):
    # fused[m, h*d + j] = W[h, m, j], so column block h of the projection is
    # exactly (X @ W[h]).
    wq_all = jnp.transpose(W_Q, (1, 0, 2)).reshape(d_model, H * d_k).astype(cdt)
    wk_all = jnp.transpose(W_K, (1, 0, 2)).reshape(d_model, H * d_k).astype(cdt)
    wv_all = jnp.transpose(W_V, (1, 0, 2)).reshape(d_model, H * d_v).astype(cdt)
    wo = W_O.astype(cdt)

    # Flatten batch into rows so projections / output matmul span B*S rows.
    q2 = Q.reshape(B * S, d_model).astype(cdt)
    k2 = K.reshape(B * S, d_model).astype(cdt)
    v2 = V.reshape(B * S, d_model).astype(cdt)

    if batch_tile is None:
        # Toy sizes: invocation-overhead bound -> one grid step for the whole
        # batch.  Realistic sizes: batch_tile=1 keeps a "parallel" batch axis
        # (pipelining + v7x megacore sharding when B >= 2).
        batch_tile = B if B * S <= 512 else 1
    assert B % batch_tile == 0
    grid = (B // batch_tile,)
    rows = batch_tile * S

    kernel = functools.partial(
        mha_kernel, num_heads=H, d_k=d_k, d_v=d_v, seq_len=S,
        batch_tile=batch_tile, mask=mask,
        approx_recip=(cdt != jnp.dtype(jnp.float32)))

    itemsize = cdt.itemsize
    flops = B * (2 * S * d_model * H * (2 * d_k + d_v)      # projections
                 + 2 * S * S * H * (d_k + d_v)              # scores + E @ V
                 + 2 * S * (H * d_v) * d_model)             # output projection
    weight_bytes = (d_model * H * (2 * d_k + d_v) + H * d_v * d_model) * itemsize
    bytes_accessed = (3 * B * S * d_model * itemsize        # Q, K, V
                      + weight_bytes                        # weights (once)
                      + B * S * d_model * 4)                # f32 output

    # Scoped-VMEM budget from the actual per-step footprint (defaults are only
    # 16/32 MiB); generous multiplier, clamped well below any chip's physical.
    io_bytes = 2 * (3 * rows * d_model * itemsize + rows * d_model * 4)
    temp_bytes = (rows * (2 * H * d_k + 2 * H * d_v) * itemsize
                  + 4 * S * S * 4)
    vmem_bytes = 2 * weight_bytes + io_bytes + temp_bytes
    vmem_limit = int(min(max(4 * vmem_bytes, 32 * 1024 * 1024),
                         48 * 1024 * 1024))

    out2 = pl.pallas_call(
        kernel,
        out_shape=jax.ShapeDtypeStruct((B * S, d_model), jnp.float32),
        grid_spec=pltpu.PrefetchScalarGridSpec(
            num_scalar_prefetch=0,
            grid=grid,
            in_specs=[
                pl.BlockSpec((rows, d_model), lambda i: (i, 0)),   # Q rows
                pl.BlockSpec((rows, d_model), lambda i: (i, 0)),   # K rows
                pl.BlockSpec((rows, d_model), lambda i: (i, 0)),   # V rows
                # Constant block indices -> each weight is DMAed exactly once.
                pl.BlockSpec((d_model, H * d_k), lambda i: (0, 0)),  # W_Q fused
                pl.BlockSpec((d_model, H * d_k), lambda i: (0, 0)),  # W_K fused
                pl.BlockSpec((d_model, H * d_v), lambda i: (0, 0)),  # W_V fused
                pl.BlockSpec((H * d_v, d_model), lambda i: (0, 0)),  # W_O
            ],
            out_specs=pl.BlockSpec((rows, d_model), lambda i: (i, 0)),
        ),
        compiler_params=pltpu.CompilerParams(
            dimension_semantics=("parallel",),
            vmem_limit_bytes=vmem_limit),
        cost_estimate=pl.CostEstimate(
            flops=flops,
            transcendentals=B * H * S * S,
            bytes_accessed=bytes_accessed),
    )(q2, k2, v2, wq_all, wk_all, wv_all, wo)

    return out2.reshape(B, S, d_model)


def reference_f32(Q, K, V, W_Q, W_K, W_V, W_O, mask=False):
    """Direct pure-JAX f32 transcription of the PyTorch forward."""
    H = W_Q.shape[0]
    S = Q.shape[1]
    heads = []
    for i in range(H):
        q = jnp.einsum("bsm,mk->bsk", Q, W_Q[i])
        k = jnp.einsum("bsm,mk->bsk", K, W_K[i])
        v = jnp.einsum("bsm,mk->bsk", V, W_V[i])
        s = jnp.einsum("bsd,btd->bst", q, k)
        if mask:
            tri = jnp.triu(jnp.full((S, S), -jnp.inf, dtype=jnp.float32), k=1)
            s = s + tri[None]
        p = jax.nn.softmax(s / math.sqrt(S), axis=-1)
        heads.append(jnp.einsum("bst,btd->bsd", p, v))
    concat = jnp.concatenate(heads, axis=-1)
    return jnp.einsum("bsk,km->bsm", concat, W_O)


def reference_matched(Q, K, V, W_Q, W_K, W_V, W_O, mask=False,
                      cast_dtype=jnp.bfloat16):
    """Rounding-matched reference for the bf16-MXU / f32-accumulate path.

    Mirrors where the kernel rounds: matmul operands cast to bf16, f32
    accumulation, scale folded into the Q projection before the cast, and
    softmax normalization applied after the E @ V matmul.
    """
    c = lambda x: x.astype(cast_dtype)
    f32 = jnp.float32
    H = W_Q.shape[0]
    S = Q.shape[1]
    scale = 1.0 / math.sqrt(S)
    heads = []
    for i in range(H):
        q = (jnp.einsum("bsm,mk->bsk", c(Q), c(W_Q[i]),
                        preferred_element_type=f32) * scale).astype(cast_dtype)
        k = jnp.einsum("bsm,mk->bsk", c(K), c(W_K[i]),
                       preferred_element_type=f32).astype(cast_dtype)
        v = jnp.einsum("bsm,mk->bsk", c(V), c(W_V[i]),
                       preferred_element_type=f32).astype(cast_dtype)
        s = jnp.einsum("bsd,btd->bst", q, k, preferred_element_type=f32)
        if mask:
            keep = jnp.tril(jnp.ones((S, S), dtype=bool))
            s = jnp.where(keep[None], s, -jnp.inf)
        m = jnp.max(s, axis=-1, keepdims=True)
        e = jnp.exp(s - m)
        denom = jnp.sum(e, axis=-1, keepdims=True)
        hu = jnp.einsum("bst,btd->bsd", e.astype(cast_dtype), v,
                        preferred_element_type=f32)
        heads.append((hu / denom).astype(cast_dtype))
    concat = jnp.concatenate(heads, axis=-1)
    return jnp.einsum("bsk,km->bsm", concat, c(W_O),
                      preferred_element_type=f32)


if __name__ == "__main__":
    # Small, deterministic problem sizes consistent with the module.
    B, S, d_model, d_k, d_v, H = 2, 8, 32, 16, 16, 4

    key = jax.random.PRNGKey(0)
    kq, kk, kv, kwq, kwk, kwv, kwo = jax.random.split(key, 7)

    Q = jax.random.normal(kq, (B, S, d_model), dtype=jnp.float32)
    K = jax.random.normal(kk, (B, S, d_model), dtype=jnp.float32)
    V = jax.random.normal(kv, (B, S, d_model), dtype=jnp.float32)

    # torch.rand -> uniform [0, 1)
    W_Q = jax.random.uniform(kwq, (H, d_model, d_k), dtype=jnp.float32)
    W_K = jax.random.uniform(kwk, (H, d_model, d_k), dtype=jnp.float32)
    W_V = jax.random.uniform(kwv, (H, d_model, d_v), dtype=jnp.float32)
    W_O = jax.random.uniform(kwo, (H * d_v, d_model), dtype=jnp.float32)

    args = (Q, K, V, W_Q, W_K, W_V, W_O)

    def check(name, out, ref, rel_tol):
        assert out.shape == ref.shape, f"{name}: shape {out.shape} vs {ref.shape}"
        err = float(jnp.max(jnp.abs(out.astype(jnp.float32)
                                    - ref.astype(jnp.float32))))
        scale = float(jnp.max(jnp.abs(ref))) + 1e-6
        assert err <= rel_tol * scale, f"{name}: max_err={err}, scale={scale}"

    # 1) f32 compute path (exact reciprocal) vs the PyTorch transcription.
    out_f32 = jax.block_until_ready(
        multihead_attention(*args, mask=False, compute_dtype=jnp.float32))
    check("f32/nomask", out_f32, reference_f32(*args, mask=False), 1e-4)

    # 2) default bf16 MXU path vs a rounding-matched bf16 reference.
    out_bf16 = jax.block_until_ready(multihead_attention(*args, mask=False))
    check("bf16/nomask", out_bf16, reference_matched(*args, mask=False), 2e-2)

    # 3) causal-mask variant (module's mask=True mode).
    out_mask = jax.block_until_ready(multihead_attention(*args, mask=True))
    check("bf16/mask", out_mask, reference_matched(*args, mask=True), 2e-2)

    print("KERNEL_OK")
</pallas_src>

<mosaic_0001>
module attributes {stable_mosaic.version = 11 : i64} {
  func.func @mha_kernel(%arg0: i32, %arg1: memref<16x32xf32, #tpu.memory_space<vmem>>, %arg2: memref<16x32xf32, #tpu.memory_space<vmem>>, %arg3: memref<16x32xf32, #tpu.memory_space<vmem>>, %arg4: memref<32x64xf32, #tpu.memory_space<vmem>>, %arg5: memref<32x64xf32, #tpu.memory_space<vmem>>, %arg6: memref<32x64xf32, #tpu.memory_space<vmem>>, %arg7: memref<64x32xf32, #tpu.memory_space<vmem>>, %arg8: memref<16x32xf32, #tpu.memory_space<vmem>>) attributes {dimension_semantics = [#tpu.dimension_semantics<parallel>], iteration_bounds = array<i64: 1>, scalar_prefetch = 0 : i64, scratch_operands = 0 : i64, tpu.core_type = #tpu.core_type<tc>, window_params = [{transform_indices = @transform_0, window_bounds = array<i64: 16, 32>}, {transform_indices = @transform_1, window_bounds = array<i64: 16, 32>}, {transform_indices = @transform_2, window_bounds = array<i64: 16, 32>}, {pipeline_mode = #tpu.pipeline_mode<synchronous>, transform_indices = @transform_3, window_bounds = array<i64: 32, 64>}, {pipeline_mode = #tpu.pipeline_mode<synchronous>, transform_indices = @transform_4, window_bounds = array<i64: 32, 64>}, {pipeline_mode = #tpu.pipeline_mode<synchronous>, transform_indices = @transform_5, window_bounds = array<i64: 32, 64>}, {pipeline_mode = #tpu.pipeline_mode<synchronous>, transform_indices = @transform_6, window_bounds = array<i64: 64, 32>}, {transform_indices = @transform_7, window_bounds = array<i64: 16, 32>}]} {
    %c0 = arith.constant 0 : index
    %c0_0 = arith.constant 0 : index
    %0 = vector.load %arg1[%c0, %c0_0] : memref<16x32xf32, #tpu.memory_space<vmem>>, vector<16x32xf32>
    %c0_1 = arith.constant 0 : index
    %c0_2 = arith.constant 0 : index
    %1 = vector.load %arg4[%c0_1, %c0_2] : memref<32x64xf32, #tpu.memory_space<vmem>>, vector<32x64xf32>
    %cst = arith.constant dense<0.000000e+00> : vector<16x64xf32>
    %2 = tpu.matmul %0, %1, %cst {dimension_numbers = #tpu.dot_dimension_numbers<[1], [0], [0], [1], [0, 0, 1, 1], [], []>} : vector<16x32xf32>, vector<32x64xf32>, vector<16x64xf32> -> vector<16x64xf32>
    %cst_3 = arith.constant 0.353553385 : f32
    %3 = vector.broadcast %cst_3 : f32 to vector<16x64xf32>
    %4 = arith.mulf %2, %3 : vector<16x64xf32>
    %c0_4 = arith.constant 0 : index
    %c0_5 = arith.constant 0 : index
    %5 = vector.load %arg2[%c0_4, %c0_5] : memref<16x32xf32, #tpu.memory_space<vmem>>, vector<16x32xf32>
    %c0_6 = arith.constant 0 : index
    %c0_7 = arith.constant 0 : index
    %6 = vector.load %arg5[%c0_6, %c0_7] : memref<32x64xf32, #tpu.memory_space<vmem>>, vector<32x64xf32>
    %cst_8 = arith.constant dense<0.000000e+00> : vector<16x64xf32>
    %7 = tpu.matmul %5, %6, %cst_8 {dimension_numbers = #tpu.dot_dimension_numbers<[1], [0], [0], [1], [0, 0, 1, 1], [], []>} : vector<16x32xf32>, vector<32x64xf32>, vector<16x64xf32> -> vector<16x64xf32>
    %c0_9 = arith.constant 0 : index
    %c0_10 = arith.constant 0 : index
    %8 = vector.load %arg3[%c0_9, %c0_10] : memref<16x32xf32, #tpu.memory_space<vmem>>, vector<16x32xf32>
    %c0_11 = arith.constant 0 : index
    %c0_12 = arith.constant 0 : index
    %9 = vector.load %arg6[%c0_11, %c0_12] : memref<32x64xf32, #tpu.memory_space<vmem>>, vector<32x64xf32>
    %cst_13 = arith.constant dense<0.000000e+00> : vector<16x64xf32>
    %10 = tpu.matmul %8, %9, %cst_13 {dimension_numbers = #tpu.dot_dimension_numbers<[1], [0], [0], [1], [0, 0, 1, 1], [], []>} : vector<16x32xf32>, vector<32x64xf32>, vector<16x64xf32> -> vector<16x64xf32>
    %11 = vector.extract_strided_slice %4 {offsets = [0, 0], sizes = [8, 16], strides = [1, 1]} : vector<16x64xf32> to vector<8x16xf32>
    %12 = vector.extract_strided_slice %7 {offsets = [0, 0], sizes = [8, 16], strides = [1, 1]} : vector<16x64xf32> to vector<8x16xf32>
    %13 = vector.extract_strided_slice %10 {offsets = [0, 0], sizes = [8, 16], strides = [1, 1]} : vector<16x64xf32> to vector<8x16xf32>
    %cst_14 = arith.constant dense<0.000000e+00> : vector<8x8xf32>
    %14 = tpu.matmul %11, %12, %cst_14 {dimension_numbers = #tpu.dot_dimension_numbers<[1], [1], [0], [0], [0, 0, 1, 0], [], []>} : vector<8x16xf32>, vector<8x16xf32>, vector<8x8xf32> -> vector<8x8xf32>
    %cst_15 = arith.constant dense<0xFF800000> : vector<8xf32>
    %15 = vector.multi_reduction <maximumf>, %14, %cst_15 [1] : vector<8x8xf32> to vector<8xf32>
    %16 = vector.shape_cast %15 : vector<8xf32> to vector<8x1xf32>
    %17 = vector.broadcast %16 : vector<8x1xf32> to vector<8x8xf32>
    %18 = arith.subf %14, %17 : vector<8x8xf32>
    %19 = math.exp %18 : vector<8x8xf32>
    %cst_16 = arith.constant dense<0.000000e+00> : vector<8xf32>
    %20 = vector.multi_reduction <add>, %19, %cst_16 [1] : vector<8x8xf32> to vector<8xf32>
    %21 = vector.shape_cast %20 : vector<8xf32> to vector<8x1xf32>
    %cst_17 = arith.constant dense<0.000000e+00> : vector<8x16xf32>
    %22 = tpu.matmul %19, %13, %cst_17 {dimension_numbers = #tpu.dot_dimension_numbers<[1], [0], [0], [1], [0, 0, 1, 1], [], []>} : vector<8x8xf32>, vector<8x16xf32>, vector<8x16xf32> -> vector<8x16xf32>
    %23 = tpu.reciprocal %21 : vector<8x1xf32> -> vector<8x1xf32>
    %24 = vector.broadcast %23 : vector<8x1xf32> to vector<8x16xf32>
    %25 = arith.mulf %22, %24 : vector<8x16xf32>
    %26 = vector.extract_strided_slice %4 {offsets = [0, 16], sizes = [8, 16], strides = [1, 1]} : vector<16x64xf32> to vector<8x16xf32>
    %27 = vector.extract_strided_slice %7 {offsets = [0, 16], sizes = [8, 16], strides = [1, 1]} : vector<16x64xf32> to vector<8x16xf32>
    %28 = vector.extract_strided_slice %10 {offsets = [0, 16], sizes = [8, 16], strides = [1, 1]} : vector<16x64xf32> to vector<8x16xf32>
    %cst_18 = arith.constant dense<0.000000e+00> : vector<8x8xf32>
    %29 = tpu.matmul %26, %27, %cst_18 {dimension_numbers = #tpu.dot_dimension_numbers<[1], [1], [0], [0], [0, 0, 1, 0], [], []>} : vector<8x16xf32>, vector<8x16xf32>, vector<8x8xf32> -> vector<8x8xf32>
    %cst_19 = arith.constant dense<0xFF800000> : vector<8xf32>
    %30 = vector.multi_reduction <maximumf>, %29, %cst_19 [1] : vector<8x8xf32> to vector<8xf32>
    %31 = vector.shape_cast %30 : vector<8xf32> to vector<8x1xf32>
    %32 = vector.broadcast %31 : vector<8x1xf32> to vector<8x8xf32>
    %33 = arith.subf %29, %32 : vector<8x8xf32>
    %34 = math.exp %33 : vector<8x8xf32>
    %cst_20 = arith.constant dense<0.000000e+00> : vector<8xf32>
    %35 = vector.multi_reduction <add>, %34, %cst_20 [1] : vector<8x8xf32> to vector<8xf32>
    %36 = vector.shape_cast %35 : vector<8xf32> to vector<8x1xf32>
    %cst_21 = arith.constant dense<0.000000e+00> : vector<8x16xf32>
    %37 = tpu.matmul %34, %28, %cst_21 {dimension_numbers = #tpu.dot_dimension_numbers<[1], [0], [0], [1], [0, 0, 1, 1], [], []>} : vector<8x8xf32>, vector<8x16xf32>, vector<8x16xf32> -> vector<8x16xf32>
    %38 = tpu.reciprocal %36 : vector<8x1xf32> -> vector<8x1xf32>
    %39 = vector.broadcast %38 : vector<8x1xf32> to vector<8x16xf32>
    %40 = arith.mulf %37, %39 : vector<8x16xf32>
    %41 = vector.extract_strided_slice %4 {offsets = [0, 32], sizes = [8, 16], strides = [1, 1]} : vector<16x64xf32> to vector<8x16xf32>
    %42 = vector.extract_strided_slice %7 {offsets = [0, 32], sizes = [8, 16], strides = [1, 1]} : vector<16x64xf32> to vector<8x16xf32>
    %43 = vector.extract_strided_slice %10 {offsets = [0, 32], sizes = [8, 16], strides = [1, 1]} : vector<16x64xf32> to vector<8x16xf32>
    %cst_22 = arith.constant dense<0.000000e+00> : vector<8x8xf32>
    %44 = tpu.matmul %41, %42, %cst_22 {dimension_numbers = #tpu.dot_dimension_numbers<[1], [1], [0], [0], [0, 0, 1, 0], [], []>} : vector<8x16xf32>, vector<8x16xf32>, vector<8x8xf32> -> vector<8x8xf32>
    %cst_23 = arith.constant dense<0xFF800000> : vector<8xf32>
    %45 = vector.multi_reduction <maximumf>, %44, %cst_23 [1] : vector<8x8xf32> to vector<8xf32>
    %46 = vector.shape_cast %45 : vector<8xf32> to vector<8x1xf32>
    %47 = vector.broadcast %46 : vector<8x1xf32> to vector<8x8xf32>
    %48 = arith.subf %44, %47 : vector<8x8xf32>
    %49 = math.exp %48 : vector<8x8xf32>
    %cst_24 = arith.constant dense<0.000000e+00> : vector<8xf32>
    %50 = vector.multi_reduction <add>, %49, %cst_24 [1] : vector<8x8xf32> to vector<8xf32>
    %51 = vector.shape_cast %50 : vector<8xf32> to vector<8x1xf32>
    %cst_25 = arith.constant dense<0.000000e+00> : vector<8x16xf32>
    %52 = tpu.matmul %49, %43, %cst_25 {dimension_numbers = #tpu.dot_dimension_numbers<[1], [0], [0], [1], [0, 0, 1, 1], [], []>} : vector<8x8xf32>, vector<8x16xf32>, vector<8x16xf32> -> vector<8x16xf32>
    %53 = tpu.reciprocal %51 : vector<8x1xf32> -> vector<8x1xf32>
    %54 = vector.broadcast %53 : vector<8x1xf32> to vector<8x16xf32>
    %55 = arith.mulf %52, %54 : vector<8x16xf32>
    %56 = vector.extract_strided_slice %4 {offsets = [0, 48], sizes = [8, 16], strides = [1, 1]} : vector<16x64xf32> to vector<8x16xf32>
    %57 = vector.extract_strided_slice %7 {offsets = [0, 48], sizes = [8, 16], strides = [1, 1]} : vector<16x64xf32> to vector<8x16xf32>
    %58 = vector.extract_strided_slice %10 {offsets = [0, 48], sizes = [8, 16], strides = [1, 1]} : vector<16x64xf32> to vector<8x16xf32>
    %cst_26 = arith.constant dense<0.000000e+00> : vector<8x8xf32>
    %59 = tpu.matmul %56, %57, %cst_26 {dimension_numbers = #tpu.dot_dimension_numbers<[1], [1], [0], [0], [0, 0, 1, 0], [], []>} : vector<8x16xf32>, vector<8x16xf32>, vector<8x8xf32> -> vector<8x8xf32>
    %cst_27 = arith.constant dense<0xFF800000> : vector<8xf32>
    %60 = vector.multi_reduction <maximumf>, %59, %cst_27 [1] : vector<8x8xf32> to vector<8xf32>
    %61 = vector.shape_cast %60 : vector<8xf32> to vector<8x1xf32>
    %62 = vector.broadcast %61 : vector<8x1xf32> to vector<8x8xf32>
    %63 = arith.subf %59, %62 : vector<8x8xf32>
    %64 = math.exp %63 : vector<8x8xf32>
    %cst_28 = arith.constant dense<0.000000e+00> : vector<8xf32>
    %65 = vector.multi_reduction <add>, %64, %cst_28 [1] : vector<8x8xf32> to vector<8xf32>
    %66 = vector.shape_cast %65 : vector<8xf32> to vector<8x1xf32>
    %cst_29 = arith.constant dense<0.000000e+00> : vector<8x16xf32>
    %67 = tpu.matmul %64, %58, %cst_29 {dimension_numbers = #tpu.dot_dimension_numbers<[1], [0], [0], [1], [0, 0, 1, 1], [], []>} : vector<8x8xf32>, vector<8x16xf32>, vector<8x16xf32> -> vector<8x16xf32>
    %68 = tpu.reciprocal %66 : vector<8x1xf32> -> vector<8x1xf32>
    %69 = vector.broadcast %68 : vector<8x1xf32> to vector<8x16xf32>
    %70 = arith.mulf %67, %69 : vector<8x16xf32>
    %71 = tpu.concatenate %25, %40, %55, %70 in 1 : vector<8x16xf32>, vector<8x16xf32>, vector<8x16xf32>, vector<8x16xf32> -> vector<8x64xf32>
    %72 = vector.extract_strided_slice %4 {offsets = [8, 0], sizes = [8, 16], strides = [1, 1]} : vector<16x64xf32> to vector<8x16xf32>
    %73 = vector.extract_strided_slice %7 {offsets = [8, 0], sizes = [8, 16], strides = [1, 1]} : vector<16x64xf32> to vector<8x16xf32>
    %74 = vector.extract_strided_slice %10 {offsets = [8, 0], sizes = [8, 16], strides = [1, 1]} : vector<16x64xf32> to vector<8x16xf32>
    %cst_30 = arith.constant dense<0.000000e+00> : vector<8x8xf32>
    %75 = tpu.matmul %72, %73, %cst_30 {dimension_numbers = #tpu.dot_dimension_numbers<[1], [1], [0], [0], [0, 0, 1, 0], [], []>} : vector<8x16xf32>, vector<8x16xf32>, vector<8x8xf32> -> vector<8x8xf32>
    %cst_31 = arith.constant dense<0xFF800000> : vector<8xf32>
    %76 = vector.multi_reduction <maximumf>, %75, %cst_31 [1] : vector<8x8xf32> to vector<8xf32>
    %77 = vector.shape_cast %76 : vector<8xf32> to vector<8x1xf32>
    %78 = vector.broadcast %77 : vector<8x1xf32> to vector<8x8xf32>
    %79 = arith.subf %75, %78 : vector<8x8xf32>
    %80 = math.exp %79 : vector<8x8xf32>
    %cst_32 = arith.constant dense<0.000000e+00> : vector<8xf32>
    %81 = vector.multi_reduction <add>, %80, %cst_32 [1] : vector<8x8xf32> to vector<8xf32>
    %82 = vector.shape_cast %81 : vector<8xf32> to vector<8x1xf32>
    %cst_33 = arith.constant dense<0.000000e+00> : vector<8x16xf32>
    %83 = tpu.matmul %80, %74, %cst_33 {dimension_numbers = #tpu.dot_dimension_numbers<[1], [0], [0], [1], [0, 0, 1, 1], [], []>} : vector<8x8xf32>, vector<8x16xf32>, vector<8x16xf32> -> vector<8x16xf32>
    %84 = tpu.reciprocal %82 : vector<8x1xf32> -> vector<8x1xf32>
    %85 = vector.broadcast %84 : vector<8x1xf32> to vector<8x16xf32>
    %86 = arith.mulf %83, %85 : vector<8x16xf32>
    %87 = vector.extract_strided_slice %4 {offsets = [8, 16], sizes = [8, 16], strides = [1, 1]} : vector<16x64xf32> to vector<8x16xf32>
    %88 = vector.extract_strided_slice %7 {offsets = [8, 16], sizes = [8, 16], strides = [1, 1]} : vector<16x64xf32> to vector<8x16xf32>
    %89 = vector.extract_strided_slice %10 {offsets = [8, 16], sizes = [8, 16], strides = [1, 1]} : vector<16x64xf32> to vector<8x16xf32>
    %cst_34 = arith.constant dense<0.000000e+00> : vector<8x8xf32>
    %90 = tpu.matmul %87, %88, %cst_34 {dimension_numbers = #tpu.dot_dimension_numbers<[1], [1], [0], [0], [0, 0, 1, 0], [], []>} : vector<8x16xf32>, vector<8x16xf32>, vector<8x8xf32> -> vector<8x8xf32>
    %cst_35 = arith.constant dense<0xFF800000> : vector<8xf32>
    %91 = vector.multi_reduction <maximumf>, %90, %cst_35 [1] : vector<8x8xf32> to vector<8xf32>
    %92 = vector.shape_cast %91 : vector<8xf32> to vector<8x1xf32>
    %93 = vector.broadcast %92 : vector<8x1xf32> to vector<8x8xf32>
    %94 = arith.subf %90, %93 : vector<8x8xf32>
    %95 = math.exp %94 : vector<8x8xf32>
    %cst_36 = arith.constant dense<0.000000e+00> : vector<8xf32>
    %96 = vector.multi_reduction <add>, %95, %cst_36 [1] : vector<8x8xf32> to vector<8xf32>
    %97 = vector.shape_cast %96 : vector<8xf32> to vector<8x1xf32>
    %cst_37 = arith.constant dense<0.000000e+00> : vector<8x16xf32>
    %98 = tpu.matmul %95, %89, %cst_37 {dimension_numbers = #tpu.dot_dimension_numbers<[1], [0], [0], [1], [0, 0, 1, 1], [], []>} : vector<8x8xf32>, vector<8x16xf32>, vector<8x16xf32> -> vector<8x16xf32>
    %99 = tpu.reciprocal %97 : vector<8x1xf32> -> vector<8x1xf32>
    %100 = vector.broadcast %99 : vector<8x1xf32> to vector<8x16xf32>
    %101 = arith.mulf %98, %100 : vector<8x16xf32>
    %102 = vector.extract_strided_slice %4 {offsets = [8, 32], sizes = [8, 16], strides = [1, 1]} : vector<16x64xf32> to vector<8x16xf32>
    %103 = vector.extract_strided_slice %7 {offsets = [8, 32], sizes = [8, 16], strides = [1, 1]} : vector<16x64xf32> to vector<8x16xf32>
    %104 = vector.extract_strided_slice %10 {offsets = [8, 32], sizes = [8, 16], strides = [1, 1]} : vector<16x64xf32> to vector<8x16xf32>
    %cst_38 = arith.constant dense<0.000000e+00> : vector<8x8xf32>
    %105 = tpu.matmul %102, %103, %cst_38 {dimension_numbers = #tpu.dot_dimension_numbers<[1], [1], [0], [0], [0, 0, 1, 0], [], []>} : vector<8x16xf32>, vector<8x16xf32>, vector<8x8xf32> -> vector<8x8xf32>
    %cst_39 = arith.constant dense<0xFF800000> : vector<8xf32>
    %106 = vector.multi_reduction <maximumf>, %105, %cst_39 [1] : vector<8x8xf32> to vector<8xf32>
    %107 = vector.shape_cast %106 : vector<8xf32> to vector<8x1xf32>
    %108 = vector.broadcast %107 : vector<8x1xf32> to vector<8x8xf32>
    %109 = arith.subf %105, %108 : vector<8x8xf32>
    %110 = math.exp %109 : vector<8x8xf32>
    %cst_40 = arith.constant dense<0.000000e+00> : vector<8xf32>
    %111 = vector.multi_reduction <add>, %110, %cst_40 [1] : vector<8x8xf32> to vector<8xf32>
    %112 = vector.shape_cast %111 : vector<8xf32> to vector<8x1xf32>
    %cst_41 = arith.constant dense<0.000000e+00> : vector<8x16xf32>
    %113 = tpu.matmul %110, %104, %cst_41 {dimension_numbers = #tpu.dot_dimension_numbers<[1], [0], [0], [1], [0, 0, 1, 1], [], []>} : vector<8x8xf32>, vector<8x16xf32>, vector<8x16xf32> -> vector<8x16xf32>
    %114 = tpu.reciprocal %112 : vector<8x1xf32> -> vector<8x1xf32>
    %115 = vector.broadcast %114 : vector<8x1xf32> to vector<8x16xf32>
    %116 = arith.mulf %113, %115 : vector<8x16xf32>
    %117 = vector.extract_strided_slice %4 {offsets = [8, 48], sizes = [8, 16], strides = [1, 1]} : vector<16x64xf32> to vector<8x16xf32>
    %118 = vector.extract_strided_slice %7 {offsets = [8, 48], sizes = [8, 16], strides = [1, 1]} : vector<16x64xf32> to vector<8x16xf32>
    %119 = vector.extract_strided_slice %10 {offsets = [8, 48], sizes = [8, 16], strides = [1, 1]} : vector<16x64xf32> to vector<8x16xf32>
    %cst_42 = arith.constant dense<0.000000e+00> : vector<8x8xf32>
    %120 = tpu.matmul %117, %118, %cst_42 {dimension_numbers = #tpu.dot_dimension_numbers<[1], [1], [0], [0], [0, 0, 1, 0], [], []>} : vector<8x16xf32>, vector<8x16xf32>, vector<8x8xf32> -> vector<8x8xf32>
    %cst_43 = arith.constant dense<0xFF800000> : vector<8xf32>
    %121 = vector.multi_reduction <maximumf>, %120, %cst_43 [1] : vector<8x8xf32> to vector<8xf32>
    %122 = vector.shape_cast %121 : vector<8xf32> to vector<8x1xf32>
    %123 = vector.broadcast %122 : vector<8x1xf32> to vector<8x8xf32>
    %124 = arith.subf %120, %123 : vector<8x8xf32>
    %125 = math.exp %124 : vector<8x8xf32>
    %cst_44 = arith.constant dense<0.000000e+00> : vector<8xf32>
    %126 = vector.multi_reduction <add>, %125, %cst_44 [1] : vector<8x8xf32> to vector<8xf32>
    %127 = vector.shape_cast %126 : vector<8xf32> to vector<8x1xf32>
    %cst_45 = arith.constant dense<0.000000e+00> : vector<8x16xf32>
    %128 = tpu.matmul %125, %119, %cst_45 {dimension_numbers = #tpu.dot_dimension_numbers<[1], [0], [0], [1], [0, 0, 1, 1], [], []>} : vector<8x8xf32>, vector<8x16xf32>, vector<8x16xf32> -> vector<8x16xf32>
    %129 = tpu.reciprocal %127 : vector<8x1xf32> -> vector<8x1xf32>
    %130 = vector.broadcast %129 : vector<8x1xf32> to vector<8x16xf32>
    %131 = arith.mulf %128, %130 : vector<8x16xf32>
    %132 = tpu.concatenate %86, %101, %116, %131 in 1 : vector<8x16xf32>, vector<8x16xf32>, vector<8x16xf32>, vector<8x16xf32> -> vector<8x64xf32>
    %133 = tpu.concatenate %71, %132 in 0 : vector<8x64xf32>, vector<8x64xf32> -> vector<16x64xf32>
    %c0_46 = arith.constant 0 : index
    %c0_47 = arith.constant 0 : index
    %134 = vector.load %arg7[%c0_46, %c0_47] : memref<64x32xf32, #tpu.memory_space<vmem>>, vector<64x32xf32>
    %cst_48 = arith.constant dense<0.000000e+00> : vector<16x32xf32>
    %135 = tpu.matmul %133, %134, %cst_48 {dimension_numbers = #tpu.dot_dimension_numbers<[1], [0], [0], [1], [0, 0, 1, 1], [], []>} : vector<16x64xf32>, vector<64x32xf32>, vector<16x32xf32> -> vector<16x32xf32>
    %c0_49 = arith.constant 0 : index
    %c0_50 = arith.constant 0 : index
    %136 = vector.load %arg8[%c0_49, %c0_50] : memref<16x32xf32, #tpu.memory_space<vmem>>, vector<16x32xf32>
    tpu.vector_store %arg8[%c0_49, %c0_50], %135 {strides = array<i32>} : memref<16x32xf32, #tpu.memory_space<vmem>>, vector<16x32xf32>,
    return
  }
  func.func @transform_0(%arg0: i32) -> (i32, i32) {
    %c0_i32 = arith.constant 0 : i32
    %c0_i32_0 = arith.constant 0 : i32
    return %arg0, %c0_i32 : i32, i32
  }
  func.func @transform_1(%arg0: i32) -> (i32, i32) {
    %c0_i32 = arith.constant 0 : i32
    %c0_i32_0 = arith.constant 0 : i32
    return %arg0, %c0_i32 : i32, i32
  }
  func.func @transform_2(%arg0: i32) -> (i32, i32) {
    %c0_i32 = arith.constant 0 : i32
    %c0_i32_0 = arith.constant 0 : i32
    return %arg0, %c0_i32 : i32, i32
  }
  func.func @transform_3(%arg0: i32) -> (i32, i32) {
    %c0_i32 = arith.constant 0 : i32
    %c0_i32_0 = arith.constant 0 : i32
    %c0_i32_1 = arith.constant 0 : i32
    return %c0_i32, %c0_i32_0 : i32, i32
  }
  func.func @transform_4(%arg0: i32) -> (i32, i32) {
    %c0_i32 = arith.constant 0 : i32
    %c0_i32_0 = arith.constant 0 : i32
    %c0_i32_1 = arith.constant 0 : i32
    return %c0_i32, %c0_i32_0 : i32, i32
  }
  func.func @transform_5(%arg0: i32) -> (i32, i32) {
    %c0_i32 = arith.constant 0 : i32
    %c0_i32_0 = arith.constant 0 : i32
    %c0_i32_1 = arith.constant 0 : i32
    return %c0_i32, %c0_i32_0 : i32, i32
  }
  func.func @transform_6(%arg0: i32) -> (i32, i32) {
    %c0_i32 = arith.constant 0 : i32
    %c0_i32_0 = arith.constant 0 : i32
    %c0_i32_1 = arith.constant 0 : i32
    return %c0_i32, %c0_i32_0 : i32, i32
  }
  func.func @transform_7(%arg0: i32) -> (i32, i32) {
    %c0_i32 = arith.constant 0 : i32
    %c0_i32_0 = arith.constant 0 : i32
    return %arg0, %c0_i32 : i32, i32
  }
}

</mosaic_0001>

<llo_original>
// kernel: tpu_custom_call.1
$region0: #{tpu_custom_call.1}
  #allocation0 [shape = 'u32[]', space=smem, size = 0x4, offset = 0x4, fixed_abs, tag = 'smem constant byte address 0x4 - core index']
  #allocation1 [shape = 'u32[144,128]{1,0:T(1,128)}', space=vmem, size = 0x12000, scoped, tag = 'internal scratch']
  %s0 = inlined_call_operand.hbm [shape: f32[16,32], index: 0, kind: input, shape index: {}]
  %s1 = inlined_call_operand.hbm [shape: f32[16,32], index: 1, kind: input, shape index: {}]
  %s2 = inlined_call_operand.hbm [shape: f32[16,32], index: 2, kind: input, shape index: {}]
  %s3 = inlined_call_operand.vmem [shape: f32[32,64], index: 3, kind: input, shape index: {}]
  %s4 = inlined_call_operand.vmem [shape: f32[32,64], index: 4, kind: input, shape index: {}]
  %s5 = inlined_call_operand.vmem [shape: f32[32,64], index: 5, kind: input, shape index: {}]
  %s6 = inlined_call_operand.vmem [shape: f32[64,32], index: 6, kind: input, shape index: {}]
  %s7 = inlined_call_operand.hbm [shape: f32[16,32], index: 7, kind: output, shape index: {}]
  %s8 = sld [smem:[#allocation0]]
  $region50: #{tpu_custom_call.1} parent=0
    _
  %s10 = ssub.s32 1, %s8
  %s11 = scalar_select 0, %s10, %s8
  $region1: #{tpu_custom_call.1} parent=0
    #allocation2 [shape = 'u8[8192]{0}', space=vmem, size = 0x2000, scoped, tag = 'input window, operand 0, single buffered']
    #allocation3 [shape = 's32[1]{0}', space=sflag, size = 0x4, scoped, tag = 'scoped memory for tpu_custom_call.1']
    #allocation4 [shape = 's32[1]{0}', space=sflag, size = 0x4, scoped, tag = 'scoped memory for tpu_custom_call.1']
    #allocation5 [shape = 'u8[8192]{0}', space=vmem, size = 0x2000, scoped, tag = 'input window, operand 1, single buffered']
    #allocation6 [shape = 's32[1]{0}', space=sflag, size = 0x4, scoped, tag = 'scoped memory for tpu_custom_call.1']
    #allocation7 [shape = 'u8[8192]{0}', space=vmem, size = 0x2000, scoped, tag = 'input window, operand 2, single buffered']
    #allocation8 [shape = 'u8[8192]{0}', space=vmem, size = 0x2000, scoped, tag = 'output window, operand 0, single buffered']
    %12 = vsyncpa [#allocation3], 0
    %13 = vsyncpa [#allocation6], 0
    %14 = vsyncpa [#allocation4], 0
    // Predicated region
    $region2: #{tpu_custom_call.1} parent=1 // pred_check
      _
    $region3: #{tpu_custom_call.1} parent=1 // pred_check_branch
      %16 = sbr.rel (0) target = $region5
    $region4: #{tpu_custom_call.1} parent=1 // pred_region
      %s18 = ssub.s32 256, 256
      %19 = vsyncadd [#allocation3], %s18
      %s20 = sshll.u32 [#allocation2], 4
      %s21 = int_to_ptr.vmem [resolvable:$true] %s20
      %26 = dma.hbm_to_vmem [thread:$0]  %s0, 256, %s21, [#allocation3], 128, 128, 8
    $region5: #{tpu_custom_call.1} parent=1 // pred_fallthru
      _
    // Predicated region
    $region6: #{tpu_custom_call.1} parent=1 // pred_check
      _
    $region7: #{tpu_custom_call.1} parent=1 // pred_check_branch
      %28 = sbr.rel (0) target = $region9
    $region8: #{tpu_custom_call.1} parent=1 // pred_region
      %s30 = ssub.s32 256, 256
      %31 = vsyncadd [#allocation6], %s30
      %s32 = sshll.u32 [#allocation5], 4
      %s33 = int_to_ptr.vmem [resolvable:$true] %s32
      %38 = dma.hbm_to_vmem [thread:$0]  %s1, 256, %s33, [#allocation6], 128, 128, 8
    $region9: #{tpu_custom_call.1} parent=1 // pred_fallthru
      _
    // Predicated region
    $region10: #{tpu_custom_call.1} parent=1 // pred_check
      _
    $region11: #{tpu_custom_call.1} parent=1 // pred_check_branch
      %40 = sbr.rel (0) target = $region13
    $region12: #{tpu_custom_call.1} parent=1 // pred_region
      %s42 = ssub.s32 256, 256
      %43 = vsyncadd [#allocation6], %s42
      %s44 = sshll.u32 [#allocation7], 4
      %s45 = int_to_ptr.vmem [resolvable:$true] %s44
      %50 = dma.hbm_to_vmem [thread:$0]  %s2, 256, %s45, [#allocation6], 128, 128, 8
    $region13: #{tpu_custom_call.1} parent=1 // pred_fallthru
      _
    // Predicated region
    $region14: #{tpu_custom_call.1} parent=1 // pred_check
      _
    $region15: #{tpu_custom_call.1} parent=1 // pred_check_branch
      %52 = sbr.rel (0) target = $region17
    $region16: #{tpu_custom_call.1} parent=1 // pred_region
      _
    $region17: #{tpu_custom_call.1} parent=1 // pred_fallthru
      _
    // Predicated region
    $region18: #{tpu_custom_call.1} parent=1 // pred_check
      _
    $region19: #{tpu_custom_call.1} parent=1 // pred_check_branch
      %54 = sbr.rel (0) target = $region21
    $region20: #{tpu_custom_call.1} parent=1 // pred_region
      _
    $region21: #{tpu_custom_call.1} parent=1 // pred_fallthru
      _
    // Predicated region
    $region22: #{tpu_custom_call.1} parent=1 // pred_check
      _
    $region23: #{tpu_custom_call.1} parent=1 // pred_check_branch
      %56 = sbr.rel (0) target = $region25
    $region24: #{tpu_custom_call.1} parent=1 // pred_region
      _
    $region25: #{tpu_custom_call.1} parent=1 // pred_fallthru
      _
    // Predicated region
    $region26: #{tpu_custom_call.1} parent=1 // pred_check
      _
    $region27: #{tpu_custom_call.1} parent=1 // pred_check_branch
      %58 = sbr.rel (0) target = $region29
    $region28: #{tpu_custom_call.1} parent=1 // pred_region
      _
    $region29: #{tpu_custom_call.1} parent=1 // pred_fallthru
      _
    // Predicated region
    $region30: #{tpu_custom_call.1} parent=1 // pred_check
      _
    $region31: #{tpu_custom_call.1} parent=1 // pred_check_branch
      %60 = sbr.rel (0) target = $region33
    $region32: #{tpu_custom_call.1} parent=1 // pred_region
      %61 = dma.done [#allocation3], 256
    $region33: #{tpu_custom_call.1} parent=1 // pred_fallthru
      _
    // Predicated region
    $region34: #{tpu_custom_call.1} parent=1 // pred_check
      _
    $region35: #{tpu_custom_call.1} parent=1 // pred_check_branch
      %63 = sbr.rel (0) target = $region37
    $region36: #{tpu_custom_call.1} parent=1 // pred_region
      %64 = dma.done [#allocation6], 256
    $region37: #{tpu_custom_call.1} parent=1 // pred_fallthru
      _
    // Predicated region
    $region38: #{tpu_custom_call.1} parent=1 // pred_check
      _
    $region39: #{tpu_custom_call.1} parent=1 // pred_check_branch
      %66 = sbr.rel (0) target = $region41
    $region40: #{tpu_custom_call.1} parent=1 // pred_region
      %67 = dma.done [#allocation6], 256
    $region41: #{tpu_custom_call.1} parent=1 // pred_fallthru
      _
    %v68 = vld [vmem:[#allocation2] sm:$0xff]
    %v69 = vld [vmem:[#allocation2 + $0x8] sm:$0xff]
    %v70 = vld [vmem:[%s3] sm:$0xff]
    %v71 = vld [vmem:[%s3 + $0x8] sm:$0xff]
    %v72 = vld [vmem:[%s3 + $0x10] sm:$0xff]
    %v73 = vld [vmem:[%s3 + $0x18] sm:$0xff]
    %vm74 = vcmask 261120
    %v76 = vsel %vm74, %v68, 0
    %v79 = vsel %vm74, %v69, 0
    %81 = vmatprep.subr.mxu0 0.0
    %82 = vmatpush1.msra.mxu0 %v70
    %83 = vmatprep.subr.mxu0 0.0
    %84 = vmatpush1.msra.mxu0 %v71
    %85 = vmatprep.subr.mxu0 0.0
    %86 = vmatpush1.msra.mxu0 %v72
    %87 = vmatprep.subr.mxu0 0.0
    %88 = vmatpush1.msra.mxu0 %v73
    %89 = vmatprep.subr.mxu0 0.0
    %90 = vmatpush1.msra.mxu0 0.0
    %91 = vmatprep.subr.mxu0 0.0
    %92 = vmatpush1.msra.mxu0 0.0
    %93 = vmatprep.subr.mxu0 0.0
    %94 = vmatpush1.msra.mxu0 0.0
    %95 = vmatprep.subr.mxu0 0.0
    %96 = vmatpush1.msra.mxu0 0.0
    %97 = vmatprep.subr.mxu0 0.0
    %98 = vmatpush1.msra.mxu0 0.0
    %99 = vmatprep.subr.mxu0 0.0
    %100 = vmatpush1.msra.mxu0 0.0
    %101 = vmatprep.subr.mxu0 0.0
    %102 = vmatpush1.msra.mxu0 0.0
    %103 = vmatprep.subr.mxu0 0.0
    %104 = vmatpush1.msra.mxu0 0.0
    %105 = vmatprep.subr.mxu0 0.0
    %106 = vmatpush1.msra.mxu0 0.0
    %107 = vmatprep.subr.mxu0 0.0
    %108 = vmatpush1.msra.mxu0 0.0
    %109 = vmatprep.subr.mxu0 0.0
    %110 = vmatpush1.msra.mxu0 0.0
    %111 = vmatprep.subr.mxu0 0.0
    %112 = vmatpush1.msra.mxu0 0.0
    %113 = vmatprep.subr.mxu0 0.0
    %114 = vmatpush1.msra.mxu0 0.0
    %115 = vmatprep.subr.mxu0 0.0
    %116 = vmatpush1.msra.mxu0 0.0
    %117 = vmatprep.subr.mxu0 0.0
    %118 = vmatpush1.msra.mxu0 0.0
    %119 = vmatprep.subr.mxu0 0.0
    %120 = vmatpush1.msra.mxu0 0.0
    %121 = vmatprep.subr.mxu0 0.0
    %122 = vmatpush1.msra.mxu0 0.0
    %123 = vmatprep.subr.mxu0 0.0
    %124 = vmatpush1.msra.mxu0 0.0
    %125 = vmatprep.subr.mxu0 0.0
    %126 = vmatpush1.msra.mxu0 0.0
    %127 = vmatprep.subr.mxu0 0.0
    %128 = vmatpush1.msra.mxu0 0.0
    %129 = vmatprep.subr.mxu0 0.0
    %130 = vmatpush1.msra.mxu0 0.0
    %131 = vmatprep.subr.mxu0 0.0
    %132 = vmatpush1.msra.mxu0 0.0
    %133 = vmatprep.subr.mxu0 0.0
    %134 = vmatpush1.msra.mxu0 0.0
    %135 = vmatprep.subr.mxu0 0.0
    %136 = vmatpush1.msra.mxu0 0.0
    %137 = vmatprep.subr.mxu0 0.0
    %138 = vmatpush1.msra.mxu0 0.0
    %139 = vmatprep.subr.mxu0 0.0
    %140 = vmatpush1.msra.mxu0 0.0
    %141 = vmatprep.subr.mxu0 0.0
    %142 = vmatpush1.msra.mxu0 0.0
    %143 = vmatprep.subr.mxu0 0.0
    %144 = vmatpush1.msra.mxu0 0.0
    %145 = vmatprep.mubr.f32.mxu0 0.0
    %146 = vmatmul.mubr.f32.gmra.mrb[0].mxu0 %v76
    %v147 = vpop.f32.mrb[0].mxu0
    %v148 = vadd.f32 0.0, %v147
    %v149 = vpop.f32.mrb[0].mxu0
    %150 = vmatprep.mubr.f32.mxu0 0.0
    %151 = vmatmul.mubr.f32.gmra.mrb[0].mxu0 %v79
    %v152 = vpop.f32.mrb[0].mxu0
    %v153 = vadd.f32 0.0, %v152
    %v154 = vpop.f32.mrb[0].mxu0
    %155 = vdwg.mxu0
    %v156 = vmul.f32 %v148, 0.35355338
    %v157 = vmul.f32 %v153, 0.35355338
    %v158 = vld [vmem:[#allocation5] sm:$0xff]
    %v159 = vld [vmem:[#allocation5 + $0x8] sm:$0xff]
    %v160 = vld [vmem:[%s4] sm:$0xff]
    %v161 = vld [vmem:[%s4 + $0x8] sm:$0xff]
    %v162 = vld [vmem:[%s4 + $0x10] sm:$0xff]
    %v163 = vld [vmem:[%s4 + $0x18] sm:$0xff]
    %v165 = vsel %vm74, %v158, 0
    %v168 = vsel %vm74, %v159, 0
    %170 = vmatprep.subr.mxu0 0.0
    %171 = vmatpush1.msra.mxu0 %v160
    %172 = vmatprep.subr.mxu0 0.0
    %173 = vmatpush1.msra.mxu0 %v161
    %174 = vmatprep.subr.mxu0 0.0
    %175 = vmatpush1.msra.mxu0 %v162
    %176 = vmatprep.subr.mxu0 0.0
    %177 = vmatpush1.msra.mxu0 %v163
    %178 = vmatprep.subr.mxu0 0.0
    %179 = vmatpush1.msra.mxu0 0.0
    %180 = vmatprep.subr.mxu0 0.0
    %181 = vmatpush1.msra.mxu0 0.0
    %182 = vmatprep.subr.mxu0 0.0
    %183 = vmatpush1.msra.mxu0 0.0
    %184 = vmatprep.subr.mxu0 0.0
    %185 = vmatpush1.msra.mxu0 0.0
    %186 = vmatprep.subr.mxu0 0.0
    %187 = vmatpush1.msra.mxu0 0.0
    %188 = vmatprep.subr.mxu0 0.0
    %189 = vmatpush1.msra.mxu0 0.0
    %190 = vmatprep.subr.mxu0 0.0
    %191 = vmatpush1.msra.mxu0 0.0
    %192 = vmatprep.subr.mxu0 0.0
    %193 = vmatpush1.msra.mxu0 0.0
    %194 = vmatprep.subr.mxu0 0.0
    %195 = vmatpush1.msra.mxu0 0.0
    %196 = vmatprep.subr.mxu0 0.0
    %197 = vmatpush1.msra.mxu0 0.0
    %198 = vmatprep.subr.mxu0 0.0
    %199 = vmatpush1.msra.mxu0 0.0
    %200 = vmatprep.subr.mxu0 0.0
    %201 = vmatpush1.msra.mxu0 0.0
    %202 = vmatprep.subr.mxu0 0.0
    %203 = vmatpush1.msra.mxu0 0.0
    %204 = vmatprep.subr.mxu0 0.0
    %205 = vmatpush1.msra.mxu0 0.0
    %206 = vmatprep.subr.mxu0 0.0
    %207 = vmatpush1.msra.mxu0 0.0
    %208 = vmatprep.subr.mxu0 0.0
    %209 = vmatpush1.msra.mxu0 0.0
    %210 = vmatprep.subr.mxu0 0.0
    %211 = vmatpush1.msra.mxu0 0.0
    %212 = vmatprep.subr.mxu0 0.0
    %213 = vmatpush1.msra.mxu0 0.0
    %214 = vmatprep.subr.mxu0 0.0
    %215 = vmatpush1.msra.mxu0 0.0
    %216 = vmatprep.subr.mxu0 0.0
    %217 = vmatpush1.msra.mxu0 0.0
    %218 = vmatprep.subr.mxu0 0.0
    %219 = vmatpush1.msra.mxu0 0.0
    %220 = vmatprep.subr.mxu0 0.0
    %221 = vmatpush1.msra.mxu0 0.0
    %222 = vmatprep.subr.mxu0 0.0
    %223 = vmatpush1.msra.mxu0 0.0
    %224 = vmatprep.subr.mxu0 0.0
    %225 = vmatpush1.msra.mxu0 0.0
    %226 = vmatprep.subr.mxu0 0.0
    %227 = vmatpush1.msra.mxu0 0.0
    %228 = vmatprep.subr.mxu0 0.0
    %229 = vmatpush1.msra.mxu0 0.0
    %230 = vmatprep.subr.mxu0 0.0
    %231 = vmatpush1.msra.mxu0 0.0
    %232 = vmatprep.subr.mxu0 0.0
    %233 = vmatpush1.msra.mxu0 0.0
    %234 = vmatprep.mubr.f32.mxu0 0.0
    %235 = vmatmul.mubr.f32.gmra.mrb[0].mxu0 %v165
    %v236 = vpop.f32.mrb[0].mxu0
    %v237 = vadd.f32 0.0, %v236
    %v238 = vpop.f32.mrb[0].mxu0
    %239 = vmatprep.mubr.f32.mxu0 0.0
    %240 = vmatmul.mubr.f32.gmra.mrb[0].mxu0 %v168
    %v241 = vpop.f32.mrb[0].mxu0
    %v242 = vadd.f32 0.0, %v241
    %v243 = vpop.f32.mrb[0].mxu0
    %244 = vdwg.mxu0
    %v245 = vld [vmem:[#allocation7] sm:$0xff]
    %v246 = vld [vmem:[#allocation7 + $0x8] sm:$0xff]
    %v247 = vld [vmem:[%s5] sm:$0xff]
    %v248 = vld [vmem:[%s5 + $0x8] sm:$0xff]
    %v249 = vld [vmem:[%s5 + $0x10] sm:$0xff]
    %v250 = vld [vmem:[%s5 + $0x18] sm:$0xff]
    %v252 = vsel %vm74, %v245, 0
    %v255 = vsel %vm74, %v246, 0
    %257 = vmatprep.subr.mxu0 0.0
    %258 = vmatpush1.msra.mxu0 %v247
    %259 = vmatprep.subr.mxu0 0.0
    %260 = vmatpush1.msra.mxu0 %v248
    %261 = vmatprep.subr.mxu0 0.0
    %262 = vmatpush1.msra.mxu0 %v249
    %263 = vmatprep.subr.mxu0 0.0
    %264 = vmatpush1.msra.mxu0 %v250
    %265 = vmatprep.subr.mxu0 0.0
    %266 = vmatpush1.msra.mxu0 0.0
    %267 = vmatprep.subr.mxu0 0.0
    %268 = vmatpush1.msra.mxu0 0.0
    %269 = vmatprep.subr.mxu0 0.0
    %270 = vmatpush1.msra.mxu0 0.0
    %271 = vmatprep.subr.mxu0 0.0
    %272 = vmatpush1.msra.mxu0 0.0
    %273 = vmatprep.subr.mxu0 0.0
    %274 = vmatpush1.msra.mxu0 0.0
    %275 = vmatprep.subr.mxu0 0.0
    %276 = vmatpush1.msra.mxu0 0.0
    %277 = vmatprep.subr.mxu0 0.0
    %278 = vmatpush1.msra.mxu0 0.0
    %279 = vmatprep.subr.mxu0 0.0
    %280 = vmatpush1.msra.mxu0 0.0
    %281 = vmatprep.subr.mxu0 0.0
    %282 = vmatpush1.msra.mxu0 0.0
    %283 = vmatprep.subr.mxu0 0.0
    %284 = vmatpush1.msra.mxu0 0.0
    %285 = vmatprep.subr.mxu0 0.0
    %286 = vmatpush1.msra.mxu0 0.0
    %287 = vmatprep.subr.mxu0 0.0
    %288 = vmatpush1.msra.mxu0 0.0
    %289 = vmatprep.subr.mxu0 0.0
    %290 = vmatpush1.msra.mxu0 0.0
    %291 = vmatprep.subr.mxu0 0.0
    %292 = vmatpush1.msra.mxu0 0.0
    %293 = vmatprep.subr.mxu0 0.0
    %294 = vmatpush1.msra.mxu0 0.0
    %295 = vmatprep.subr.mxu0 0.0
    %296 = vmatpush1.msra.mxu0 0.0
    %297 = vmatprep.subr.mxu0 0.0
    %298 = vmatpush1.msra.mxu0 0.0
    %299 = vmatprep.subr.mxu0 0.0
    %300 = vmatpush1.msra.mxu0 0.0
    %301 = vmatprep.subr.mxu0 0.0
    %302 = vmatpush1.msra.mxu0 0.0
    %303 = vmatprep.subr.mxu0 0.0
    %304 = vmatpush1.msra.mxu0 0.0
    %305 = vmatprep.subr.mxu0 0.0
    %306 = vmatpush1.msra.mxu0 0.0
    %307 = vmatprep.subr.mxu0 0.0
    %308 = vmatpush1.msra.mxu0 0.0
    %309 = vmatprep.subr.mxu0 0.0
    %310 = vmatpush1.msra.mxu0 0.0
    %311 = vmatprep.subr.mxu0 0.0
    %312 = vmatpush1.msra.mxu0 0.0
    %313 = vmatprep.subr.mxu0 0.0
    %314 = vmatpush1.msra.mxu0 0.0
    %315 = vmatprep.subr.mxu0 0.0
    %316 = vmatpush1.msra.mxu0 0.0
    %317 = vmatprep.subr.mxu0 0.0
    %318 = vmatpush1.msra.mxu0 0.0
    %319 = vmatprep.subr.mxu0 0.0
    %320 = vmatpush1.msra.mxu0 0.0
    %321 = vmatprep.mubr.f32.mxu0 0.0
    %322 = vmatmul.mubr.f32.gmra.mrb[0].mxu0 %v252
    %v323 = vpop.f32.mrb[0].mxu0
    %v324 = vadd.f32 0.0, %v323
    %v325 = vpop.f32.mrb[0].mxu0
    %326 = vmatprep.mubr.f32.mxu0 0.0
    %327 = vmatmul.mubr.f32.gmra.mrb[0].mxu0 %v255
    %v328 = vpop.f32.mrb[0].mxu0
    %v329 = vadd.f32 0.0, %v328
    %v330 = vpop.f32.mrb[0].mxu0
    %331 = vdwg.mxu0
    %vm332 = vcmask 130048
    %v334 = vsel %vm332, %v156, 0
    %v337 = vsel %vm332, %v237, 0
    %339 = vmatprep.subr.mxu0 0.0
    %340 = vmatpush1.xpose.msra.mxu0 %v337
    %341 = vmatprep.subr.mxu0 0.0
    %342 = vmatpush1.xpose.msra.mxu0 0.0
    %343 = vmatprep.subr.mxu0 0.0
    %344 = vmatpush1.xpose.msra.mxu0 0.0
    %345 = vmatprep.subr.mxu0 0.0
    %346 = vmatpush1.xpose.msra.mxu0 0.0
    %347 = vmatprep.subr.mxu0 0.0
    %348 = vmatpush1.xpose.msra.mxu0 0.0
    %349 = vmatprep.subr.mxu0 0.0
    %350 = vmatpush1.xpose.msra.mxu0 0.0
    %351 = vmatprep.subr.mxu0 0.0
    %352 = vmatpush1.xpose.msra.mxu0 0.0
    %353 = vmatprep.subr.mxu0 0.0
    %354 = vmatpush1.xpose.msra.mxu0 0.0
    %355 = vmatprep.subr.mxu0 0.0
    %356 = vmatpush1.xpose.msra.mxu0 0.0
    %357 = vmatprep.subr.mxu0 0.0
    %358 = vmatpush1.xpose.msra.mxu0 0.0
    %359 = vmatprep.subr.mxu0 0.0
    %360 = vmatpush1.xpose.msra.mxu0 0.0
    %361 = vmatprep.subr.mxu0 0.0
    %362 = vmatpush1.xpose.msra.mxu0 0.0
    %363 = vmatprep.subr.mxu0 0.0
    %364 = vmatpush1.xpose.msra.mxu0 0.0
    %365 = vmatprep.subr.mxu0 0.0
    %366 = vmatpush1.xpose.msra.mxu0 0.0
    %367 = vmatprep.subr.mxu0 0.0
    %368 = vmatpush1.xpose.msra.mxu0 0.0
    %369 = vmatprep.subr.mxu0 0.0
    %370 = vmatpush1.xpose.msra.mxu0 0.0
    %371 = vmatprep.subr.mxu0 0.0
    %372 = vmatpush1.xpose.msra.mxu0 0.0
    %373 = vmatprep.subr.mxu0 0.0
    %374 = vmatpush1.xpose.msra.mxu0 0.0
    %375 = vmatprep.subr.mxu0 0.0
    %376 = vmatpush1.xpose.msra.mxu0 0.0
    %377 = vmatprep.subr.mxu0 0.0
    %378 = vmatpush1.xpose.msra.mxu0 0.0
    %379 = vmatprep.subr.mxu0 0.0
    %380 = vmatpush1.xpose.msra.mxu0 0.0
    %381 = vmatprep.subr.mxu0 0.0
    %382 = vmatpush1.xpose.msra.mxu0 0.0
    %383 = vmatprep.subr.mxu0 0.0
    %384 = vmatpush1.xpose.msra.mxu0 0.0
    %385 = vmatprep.subr.mxu0 0.0
    %386 = vmatpush1.xpose.msra.mxu0 0.0
    %387 = vmatprep.subr.mxu0 0.0
    %388 = vmatpush1.xpose.msra.mxu0 0.0
    %389 = vmatprep.subr.mxu0 0.0
    %390 = vmatpush1.xpose.msra.mxu0 0.0
    %391 = vmatprep.subr.mxu0 0.0
    %392 = vmatpush1.xpose.msra.mxu0 0.0
    %393 = vmatprep.subr.mxu0 0.0
    %394 = vmatpush1.xpose.msra.mxu0 0.0
    %395 = vmatprep.subr.mxu0 0.0
    %396 = vmatpush1.xpose.msra.mxu0 0.0
    %397 = vmatprep.subr.mxu0 0.0
    %398 = vmatpush1.xpose.msra.mxu0 0.0
    %399 = vmatprep.subr.mxu0 0.0
    %400 = vmatpush1.xpose.msra.mxu0 0.0
    %401 = vmatprep.subr.mxu0 0.0
    %402 = vmatpush1.xpose.msra.mxu0 0.0
    %403 = vmatprep.mubr.f32.mxu0 0.0
    %404 = vmatmul.mubr.f32.gmra.mrb[0].mxu0 %v334
    %v405 = vpop.f32.mrb[0].mxu0
    %v406 = vadd.f32 0.0, %v405
    %v407 = vpop.f32.mrb[0].mxu0
    %408 = vdwg.mxu0
    %vm409 = vcmask 64512
    %v410 = vsel %vm409, %v406, -inf
    %411 = vmax.xlane.f32.xlu0 %v410
    %v412 = vpop.xlane.xlu0 %411
    %v413 = vsub.f32 %v406, %v412
    %v414 = vmul.f32 %v413, 1.442695
    %v415 = vpow.pop %v414
    %v416 = vsel %vm409, %v415, 0.0
    %417 = vadd.xlane.f32.xlu0 %v416
    %v418 = vpop.xlane.xlu0 %417
    %v420 = vsel %vm409, %v415, 0
    %422 = vmatprep.subr.mxu0 0.0
    %423 = vmatpush1.msra.mxu0 %v324
    %424 = vmatprep.subr.mxu0 0.0
    %425 = vmatpush1.msra.mxu0 0.0
    %426 = vmatprep.subr.mxu0 0.0
    %427 = vmatpush1.msra.mxu0 0.0
    %428 = vmatprep.subr.mxu0 0.0
    %429 = vmatpush1.msra.mxu0 0.0
    %430 = vmatprep.subr.mxu0 0.0
    %431 = vmatpush1.msra.mxu0 0.0
    %432 = vmatprep.subr.mxu0 0.0
    %433 = vmatpush1.msra.mxu0 0.0
    %434 = vmatprep.subr.mxu0 0.0
    %435 = vmatpush1.msra.mxu0 0.0
    %436 = vmatprep.subr.mxu0 0.0
    %437 = vmatpush1.msra.mxu0 0.0
    %438 = vmatprep.subr.mxu0 0.0
    %439 = vmatpush1.msra.mxu0 0.0
    %440 = vmatprep.subr.mxu0 0.0
    %441 = vmatpush1.msra.mxu0 0.0
    %442 = vmatprep.subr.mxu0 0.0
    %443 = vmatpush1.msra.mxu0 0.0
    %444 = vmatprep.subr.mxu0 0.0
    %445 = vmatpush1.msra.mxu0 0.0
    %446 = vmatprep.subr.mxu0 0.0
    %447 = vmatpush1.msra.mxu0 0.0
    %448 = vmatprep.subr.mxu0 0.0
    %449 = vmatpush1.msra.mxu0 0.0
    %450 = vmatprep.subr.mxu0 0.0
    %451 = vmatpush1.msra.mxu0 0.0
    %452 = vmatprep.subr.mxu0 0.0
    %453 = vmatpush1.msra.mxu0 0.0
    %454 = vmatprep.subr.mxu0 0.0
    %455 = vmatpush1.msra.mxu0 0.0
    %456 = vmatprep.subr.mxu0 0.0
    %457 = vmatpush1.msra.mxu0 0.0
    %458 = vmatprep.subr.mxu0 0.0
    %459 = vmatpush1.msra.mxu0 0.0
    %460 = vmatprep.subr.mxu0 0.0
    %461 = vmatpush1.msra.mxu0 0.0
    %462 = vmatprep.subr.mxu0 0.0
    %463 = vmatpush1.msra.mxu0 0.0
    %464 = vmatprep.subr.mxu0 0.0
    %465 = vmatpush1.msra.mxu0 0.0
    %466 = vmatprep.subr.mxu0 0.0
    %467 = vmatpush1.msra.mxu0 0.0
    %468 = vmatprep.subr.mxu0 0.0
    %469 = vmatpush1.msra.mxu0 0.0
    %470 = vmatprep.subr.mxu0 0.0
    %471 = vmatpush1.msra.mxu0 0.0
    %472 = vmatprep.subr.mxu0 0.0
    %473 = vmatpush1.msra.mxu0 0.0
    %474 = vmatprep.subr.mxu0 0.0
    %475 = vmatpush1.msra.mxu0 0.0
    %476 = vmatprep.subr.mxu0 0.0
    %477 = vmatpush1.msra.mxu0 0.0
    %478 = vmatprep.subr.mxu0 0.0
    %479 = vmatpush1.msra.mxu0 0.0
    %480 = vmatprep.subr.mxu0 0.0
    %481 = vmatpush1.msra.mxu0 0.0
    %482 = vmatprep.subr.mxu0 0.0
    %483 = vmatpush1.msra.mxu0 0.0
    %484 = vmatprep.subr.mxu0 0.0
    %485 = vmatpush1.msra.mxu0 0.0
    %486 = vmatprep.mubr.f32.mxu0 0.0
    %487 = vmatmul.mubr.f32.gmra.mrb[0].mxu0 %v420
    %v488 = vpop.f32.mrb[0].mxu0
    %v489 = vadd.f32 0.0, %v488
    %v490 = vpop.f32.mrb[0].mxu0
    %491 = vdwg.mxu0
    %v492 = vrcp.pop %v418
    %v493 = vmul.f32 %v489, %v492
    %494 = vrot.lane.b32.xlu0 %v156, 112
    %v495 = vpop.permute.xlu0 %494
    %496 = vrot.lane.b32.xlu0 %v237, 112
    %v497 = vpop.permute.xlu0 %496
    %v498 = vsel %vm332, %v495, 0
    %v500 = vsel %vm332, %v497, 0
    %502 = vmatprep.subr.mxu0 0.0
    %503 = vmatpush1.xpose.msra.mxu0 %v500
    %504 = vmatprep.subr.mxu0 0.0
    %505 = vmatpush1.xpose.msra.mxu0 0.0
    %506 = vmatprep.subr.mxu0 0.0
    %507 = vmatpush1.xpose.msra.mxu0 0.0
    %508 = vmatprep.subr.mxu0 0.0
    %509 = vmatpush1.xpose.msra.mxu0 0.0
    %510 = vmatprep.subr.mxu0 0.0
    %511 = vmatpush1.xpose.msra.mxu0 0.0
    %512 = vmatprep.subr.mxu0 0.0
    %513 = vmatpush1.xpose.msra.mxu0 0.0
    %514 = vmatprep.subr.mxu0 0.0
    %515 = vmatpush1.xpose.msra.mxu0 0.0
    %516 = vmatprep.subr.mxu0 0.0
    %517 = vmatpush1.xpose.msra.mxu0 0.0
    %518 = vmatprep.subr.mxu0 0.0
    %519 = vmatpush1.xpose.msra.mxu0 0.0
    %520 = vmatprep.subr.mxu0 0.0
    %521 = vmatpush1.xpose.msra.mxu0 0.0
    %522 = vmatprep.subr.mxu0 0.0
    %523 = vmatpush1.xpose.msra.mxu0 0.0
    %524 = vmatprep.subr.mxu0 0.0
    %525 = vmatpush1.xpose.msra.mxu0 0.0
    %526 = vmatprep.subr.mxu0 0.0
    %527 = vmatpush1.xpose.msra.mxu0 0.0
    %528 = vmatprep.subr.mxu0 0.0
    %529 = vmatpush1.xpose.msra.mxu0 0.0
    %530 = vmatprep.subr.mxu0 0.0
    %531 = vmatpush1.xpose.msra.mxu0 0.0
    %532 = vmatprep.subr.mxu0 0.0
    %533 = vmatpush1.xpose.msra.mxu0 0.0
    %534 = vmatprep.subr.mxu0 0.0
    %535 = vmatpush1.xpose.msra.mxu0 0.0
    %536 = vmatprep.subr.mxu0 0.0
    %537 = vmatpush1.xpose.msra.mxu0 0.0
    %538 = vmatprep.subr.mxu0 0.0
    %539 = vmatpush1.xpose.msra.mxu0 0.0
    %540 = vmatprep.subr.mxu0 0.0
    %541 = vmatpush1.xpose.msra.mxu0 0.0
    %542 = vmatprep.subr.mxu0 0.0
    %543 = vmatpush1.xpose.msra.mxu0 0.0
    %544 = vmatprep.subr.mxu0 0.0
    %545 = vmatpush1.xpose.msra.mxu0 0.0
    %546 = vmatprep.subr.mxu0 0.0
    %547 = vmatpush1.xpose.msra.mxu0 0.0
    %548 = vmatprep.subr.mxu0 0.0
    %549 = vmatpush1.xpose.msra.mxu0 0.0
    %550 = vmatprep.subr.mxu0 0.0
    %551 = vmatpush1.xpose.msra.mxu0 0.0
    %552 = vmatprep.subr.mxu0 0.0
    %553 = vmatpush1.xpose.msra.mxu0 0.0
    %554 = vmatprep.subr.mxu0 0.0
    %555 = vmatpush1.xpose.msra.mxu0 0.0
    %556 = vmatprep.subr.mxu0 0.0
    %557 = vmatpush1.xpose.msra.mxu0 0.0
    %558 = vmatprep.subr.mxu0 0.0
    %559 = vmatpush1.xpose.msra.mxu0 0.0
    %560 = vmatprep.subr.mxu0 0.0
    %561 = vmatpush1.xpose.msra.mxu0 0.0
    %562 = vmatprep.subr.mxu0 0.0
    %563 = vmatpush1.xpose.msra.mxu0 0.0
    %564 = vmatprep.subr.mxu0 0.0
    %565 = vmatpush1.xpose.msra.mxu0 0.0
    %566 = vmatprep.mubr.f32.mxu0 0.0
    %567 = vmatmul.mubr.f32.gmra.mrb[0].mxu0 %v498
    %v568 = vpop.f32.mrb[0].mxu0
    %v569 = vadd.f32 0.0, %v568
    %v570 = vpop.f32.mrb[0].mxu0
    %571 = vdwg.mxu0
    %v572 = vsel %vm409, %v569, -inf
    %573 = vmax.xlane.f32.xlu0 %v572
    %v574 = vpop.xlane.xlu0 %573
    %v575 = vsub.f32 %v569, %v574
    %v576 = vmul.f32 %v575, 1.442695
    %v577 = vpow.pop %v576
    %v578 = vsel %vm409, %v577, 0.0
    %579 = vadd.xlane.f32.xlu0 %v578
    %v580 = vpop.xlane.xlu0 %579
    %582 = vrot.lane.b32.xlu0 %v324, 112
    %v583 = vpop.permute.xlu0 %582
    %v586 = vsel %vm409, %v577, 0
    %588 = vmatprep.subr.mxu0 0.0
    %589 = vmatpush1.msra.mxu0 %v583
    %590 = vmatprep.subr.mxu0 0.0
    %591 = vmatpush1.msra.mxu0 0.0
    %592 = vmatprep.subr.mxu0 0.0
    %593 = vmatpush1.msra.mxu0 0.0
    %594 = vmatprep.subr.mxu0 0.0
    %595 = vmatpush1.msra.mxu0 0.0
    %596 = vmatprep.subr.mxu0 0.0
    %597 = vmatpush1.msra.mxu0 0.0
    %598 = vmatprep.subr.mxu0 0.0
    %599 = vmatpush1.msra.mxu0 0.0
    %600 = vmatprep.subr.mxu0 0.0
    %601 = vmatpush1.msra.mxu0 0.0
    %602 = vmatprep.subr.mxu0 0.0
    %603 = vmatpush1.msra.mxu0 0.0
    %604 = vmatprep.subr.mxu0 0.0
    %605 = vmatpush1.msra.mxu0 0.0
    %606 = vmatprep.subr.mxu0 0.0
    %607 = vmatpush1.msra.mxu0 0.0
    %608 = vmatprep.subr.mxu0 0.0
    %609 = vmatpush1.msra.mxu0 0.0
    %610 = vmatprep.subr.mxu0 0.0
    %611 = vmatpush1.msra.mxu0 0.0
    %612 = vmatprep.subr.mxu0 0.0
    %613 = vmatpush1.msra.mxu0 0.0
    %614 = vmatprep.subr.mxu0 0.0
    %615 = vmatpush1.msra.mxu0 0.0
    %616 = vmatprep.subr.mxu0 0.0
    %617 = vmatpush1.msra.mxu0 0.0
    %618 = vmatprep.subr.mxu0 0.0
    %619 = vmatpush1.msra.mxu0 0.0
    %620 = vmatprep.subr.mxu0 0.0
    %621 = vmatpush1.msra.mxu0 0.0
    %622 = vmatprep.subr.mxu0 0.0
    %623 = vmatpush1.msra.mxu0 0.0
    %624 = vmatprep.subr.mxu0 0.0
    %625 = vmatpush1.msra.mxu0 0.0
    %626 = vmatprep.subr.mxu0 0.0
    %627 = vmatpush1.msra.mxu0 0.0
    %628 = vmatprep.subr.mxu0 0.0
    %629 = vmatpush1.msra.mxu0 0.0
    %630 = vmatprep.subr.mxu0 0.0
    %631 = vmatpush1.msra.mxu0 0.0
    %632 = vmatprep.subr.mxu0 0.0
    %633 = vmatpush1.msra.mxu0 0.0
    %634 = vmatprep.subr.mxu0 0.0
    %635 = vmatpush1.msra.mxu0 0.0
    %636 = vmatprep.subr.mxu0 0.0
    %637 = vmatpush1.msra.mxu0 0.0
    %638 = vmatprep.subr.mxu0 0.0
    %639 = vmatpush1.msra.mxu0 0.0
    %640 = vmatprep.subr.mxu0 0.0
    %641 = vmatpush1.msra.mxu0 0.0
    %642 = vmatprep.subr.mxu0 0.0
    %643 = vmatpush1.msra.mxu0 0.0
    %644 = vmatprep.subr.mxu0 0.0
    %645 = vmatpush1.msra.mxu0 0.0
    %646 = vmatprep.subr.mxu0 0.0
    %647 = vmatpush1.msra.mxu0 0.0
    %648 = vmatprep.subr.mxu0 0.0
    %649 = vmatpush1.msra.mxu0 0.0
    %650 = vmatprep.subr.mxu0 0.0
    %651 = vmatpush1.msra.mxu0 0.0
    %652 = vmatprep.mubr.f32.mxu0 0.0
    %653 = vmatmul.mubr.f32.gmra.mrb[0].mxu0 %v586
    %v654 = vpop.f32.mrb[0].mxu0
    %v655 = vadd.f32 0.0, %v654
    %v656 = vpop.f32.mrb[0].mxu0
    %657 = vdwg.mxu0
    %v658 = vrcp.pop %v580
    %v659 = vmul.f32 %v655, %v658
    %660 = vrot.lane.b32.xlu0 %v156, 96
    %v661 = vpop.permute.xlu0 %660
    %662 = vrot.lane.b32.xlu0 %v237, 96
    %v663 = vpop.permute.xlu0 %662
    %v664 = vsel %vm332, %v661, 0
    %v666 = vsel %vm332, %v663, 0
    %668 = vmatprep.subr.mxu0 0.0
    %669 = vmatpush1.xpose.msra.mxu0 %v666
    %670 = vmatprep.subr.mxu0 0.0
    %671 = vmatpush1.xpose.msra.mxu0 0.0
    %672 = vmatprep.subr.mxu0 0.0
    %673 = vmatpush1.xpose.msra.mxu0 0.0
    %674 = vmatprep.subr.mxu0 0.0
    %675 = vmatpush1.xpose.msra.mxu0 0.0
    %676 = vmatprep.subr.mxu0 0.0
    %677 = vmatpush1.xpose.msra.mxu0 0.0
    %678 = vmatprep.subr.mxu0 0.0
    %679 = vmatpush1.xpose.msra.mxu0 0.0
    %680 = vmatprep.subr.mxu0 0.0
    %681 = vmatpush1.xpose.msra.mxu0 0.0
    %682 = vmatprep.subr.mxu0 0.0
    %683 = vmatpush1.xpose.msra.mxu0 0.0
    %684 = vmatprep.subr.mxu0 0.0
    %685 = vmatpush1.xpose.msra.mxu0 0.0
    %686 = vmatprep.subr.mxu0 0.0
    %687 = vmatpush1.xpose.msra.mxu0 0.0
    %688 = vmatprep.subr.mxu0 0.0
    %689 = vmatpush1.xpose.msra.mxu0 0.0
    %690 = vmatprep.subr.mxu0 0.0
    %691 = vmatpush1.xpose.msra.mxu0 0.0
    %692 = vmatprep.subr.mxu0 0.0
    %693 = vmatpush1.xpose.msra.mxu0 0.0
    %694 = vmatprep.subr.mxu0 0.0
    %695 = vmatpush1.xpose.msra.mxu0 0.0
    %696 = vmatprep.subr.mxu0 0.0
    %697 = vmatpush1.xpose.msra.mxu0 0.0
    %698 = vmatprep.subr.mxu0 0.0
    %699 = vmatpush1.xpose.msra.mxu0 0.0
    %700 = vmatprep.subr.mxu0 0.0
    %701 = vmatpush1.xpose.msra.mxu0 0.0
    %702 = vmatprep.subr.mxu0 0.0
    %703 = vmatpush1.xpose.msra.mxu0 0.0
    %704 = vmatprep.subr.mxu0 0.0
    %705 = vmatpush1.xpose.msra.mxu0 0.0
    %706 = vmatprep.subr.mxu0 0.0
    %707 = vmatpush1.xpose.msra.mxu0 0.0
    %708 = vmatprep.subr.mxu0 0.0
    %709 = vmatpush1.xpose.msra.mxu0 0.0
    %710 = vmatprep.subr.mxu0 0.0
    %711 = vmatpush1.xpose.msra.mxu0 0.0
    %712 = vmatprep.subr.mxu0 0.0
    %713 = vmatpush1.xpose.msra.mxu0 0.0
    %714 = vmatprep.subr.mxu0 0.0
    %715 = vmatpush1.xpose.msra.mxu0 0.0
    %716 = vmatprep.subr.mxu0 0.0
    %717 = vmatpush1.xpose.msra.mxu0 0.0
    %718 = vmatprep.subr.mxu0 0.0
    %719 = vmatpush1.xpose.msra.mxu0 0.0
    %720 = vmatprep.subr.mxu0 0.0
    %721 = vmatpush1.xpose.msra.mxu0 0.0
    %722 = vmatprep.subr.mxu0 0.0
    %723 = vmatpush1.xpose.msra.mxu0 0.0
    %724 = vmatprep.subr.mxu0 0.0
    %725 = vmatpush1.xpose.msra.mxu0 0.0
    %726 = vmatprep.subr.mxu0 0.0
    %727 = vmatpush1.xpose.msra.mxu0 0.0
    %728 = vmatprep.subr.mxu0 0.0
    %729 = vmatpush1.xpose.msra.mxu0 0.0
    %730 = vmatprep.subr.mxu0 0.0
    %731 = vmatpush1.xpose.msra.mxu0 0.0
    %732 = vmatprep.mubr.f32.mxu0 0.0
    %733 = vmatmul.mubr.f32.gmra.mrb[0].mxu0 %v664
    %v734 = vpop.f32.mrb[0].mxu0
    %v735 = vadd.f32 0.0, %v734
    %v736 = vpop.f32.mrb[0].mxu0
    %737 = vdwg.mxu0
    %v738 = vsel %vm409, %v735, -inf
    %739 = vmax.xlane.f32.xlu0 %v738
    %v740 = vpop.xlane.xlu0 %739
    %v741 = vsub.f32 %v735, %v740
    %v742 = vmul.f32 %v741, 1.442695
    %v743 = vpow.pop %v742
    %v744 = vsel %vm409, %v743, 0.0
    %745 = vadd.xlane.f32.xlu0 %v744
    %v746 = vpop.xlane.xlu0 %745
    %747 = vrot.lane.b32.xlu0 %v324, 96
    %v748 = vpop.permute.xlu0 %747
    %v751 = vsel %vm409, %v743, 0
    %753 = vmatprep.subr.mxu0 0.0
    %754 = vmatpush1.msra.mxu0 %v748
    %755 = vmatprep.subr.mxu0 0.0
    %756 = vmatpush1.msra.mxu0 0.0
    %757 = vmatprep.subr.mxu0 0.0
    %758 = vmatpush1.msra.mxu0 0.0
    %759 = vmatprep.subr.mxu0 0.0
    %760 = vmatpush1.msra.mxu0 0.0
    %761 = vmatprep.subr.mxu0 0.0
    %762 = vmatpush1.msra.mxu0 0.0
    %763 = vmatprep.subr.mxu0 0.0
    %764 = vmatpush1.msra.mxu0 0.0
    %765 = vmatprep.subr.mxu0 0.0
    %766 = vmatpush1.msra.mxu0 0.0
    %767 = vmatprep.subr.mxu0 0.0
    %768 = vmatpush1.msra.mxu0 0.0
    %769 = vmatprep.subr.mxu0 0.0
    %770 = vmatpush1.msra.mxu0 0.0
    %771 = vmatprep.subr.mxu0 0.0
    %772 = vmatpush1.msra.mxu0 0.0
    %773 = vmatprep.subr.mxu0 0.0
    %774 = vmatpush1.msra.mxu0 0.0
    %775 = vmatprep.subr.mxu0 0.0
    %776 = vmatpush1.msra.mxu0 0.0
    %777 = vmatprep.subr.mxu0 0.0
    %778 = vmatpush1.msra.mxu0 0.0
    %779 = vmatprep.subr.mxu0 0.0
    %780 = vmatpush1.msra.mxu0 0.0
    %781 = vmatprep.subr.mxu0 0.0
    %782 = vmatpush1.msra.mxu0 0.0
    %783 = vmatprep.subr.mxu0 0.0
    %784 = vmatpush1.msra.mxu0 0.0
    %785 = vmatprep.subr.mxu0 0.0
    %786 = vmatpush1.msra.mxu0 0.0
    %787 = vmatprep.subr.mxu0 0.0
    %788 = vmatpush1.msra.mxu0 0.0
    %789 = vmatprep.subr.mxu0 0.0
    %790 = vmatpush1.msra.mxu0 0.0
    %791 = vmatprep.subr.mxu0 0.0
    %792 = vmatpush1.msra.mxu0 0.0
    %793 = vmatprep.subr.mxu0 0.0
    %794 = vmatpush1.msra.mxu0 0.0
    %795 = vmatprep.subr.mxu0 0.0
    %796 = vmatpush1.msra.mxu0 0.0
    %797 = vmatprep.subr.mxu0 0.0
    %798 = vmatpush1.msra.mxu0 0.0
    %799 = vmatprep.subr.mxu0 0.0
    %800 = vmatpush1.msra.mxu0 0.0
    %801 = vmatprep.subr.mxu0 0.0
    %802 = vmatpush1.msra.mxu0 0.0
    %803 = vmatprep.subr.mxu0 0.0
    %804 = vmatpush1.msra.mxu0 0.0
    %805 = vmatprep.subr.mxu0 0.0
    %806 = vmatpush1.msra.mxu0 0.0
    %807 = vmatprep.subr.mxu0 0.0
    %808 = vmatpush1.msra.mxu0 0.0
    %809 = vmatprep.subr.mxu0 0.0
    %810 = vmatpush1.msra.mxu0 0.0
    %811 = vmatprep.subr.mxu0 0.0
    %812 = vmatpush1.msra.mxu0 0.0
    %813 = vmatprep.subr.mxu0 0.0
    %814 = vmatpush1.msra.mxu0 0.0
    %815 = vmatprep.subr.mxu0 0.0
    %816 = vmatpush1.msra.mxu0 0.0
    %817 = vmatprep.mubr.f32.mxu0 0.0
    %818 = vmatmul.mubr.f32.gmra.mrb[0].mxu0 %v751
    %v819 = vpop.f32.mrb[0].mxu0
    %v820 = vadd.f32 0.0, %v819
    %v821 = vpop.f32.mrb[0].mxu0
    %822 = vdwg.mxu0
    %v823 = vrcp.pop %v746
    %v824 = vmul.f32 %v820, %v823
    %825 = vrot.lane.b32.xlu0 %v156, 80
    %v826 = vpop.permute.xlu0 %825
    %827 = vrot.lane.b32.xlu0 %v237, 80
    %v828 = vpop.permute.xlu0 %827
    %v829 = vsel %vm332, %v826, 0
    %v831 = vsel %vm332, %v828, 0
    %833 = vmatprep.subr.mxu0 0.0
    %834 = vmatpush1.xpose.msra.mxu0 %v831
    %835 = vmatprep.subr.mxu0 0.0
    %836 = vmatpush1.xpose.msra.mxu0 0.0
    %837 = vmatprep.subr.mxu0 0.0
    %838 = vmatpush1.xpose.msra.mxu0 0.0
    %839 = vmatprep.subr.mxu0 0.0
    %840 = vmatpush1.xpose.msra.mxu0 0.0
    %841 = vmatprep.subr.mxu0 0.0
    %842 = vmatpush1.xpose.msra.mxu0 0.0
    %843 = vmatprep.subr.mxu0 0.0
    %844 = vmatpush1.xpose.msra.mxu0 0.0
    %845 = vmatprep.subr.mxu0 0.0
    %846 = vmatpush1.xpose.msra.mxu0 0.0
    %847 = vmatprep.subr.mxu0 0.0
    %848 = vmatpush1.xpose.msra.mxu0 0.0
    %849 = vmatprep.subr.mxu0 0.0
    %850 = vmatpush1.xpose.msra.mxu0 0.0
    %851 = vmatprep.subr.mxu0 0.0
    %852 = vmatpush1.xpose.msra.mxu0 0.0
    %853 = vmatprep.subr.mxu0 0.0
    %854 = vmatpush1.xpose.msra.mxu0 0.0
    %855 = vmatprep.subr.mxu0 0.0
    %856 = vmatpush1.xpose.msra.mxu0 0.0
    %857 = vmatprep.subr.mxu0 0.0
    %858 = vmatpush1.xpose.msra.mxu0 0.0
    %859 = vmatprep.subr.mxu0 0.0
    %860 = vmatpush1.xpose.msra.mxu0 0.0
    %861 = vmatprep.subr.mxu0 0.0
    %862 = vmatpush1.xpose.msra.mxu0 0.0
    %863 = vmatprep.subr.mxu0 0.0
    %864 = vmatpush1.xpose.msra.mxu0 0.0
    %865 = vmatprep.subr.mxu0 0.0
    %866 = vmatpush1.xpose.msra.mxu0 0.0
    %867 = vmatprep.subr.mxu0 0.0
    %868 = vmatpush1.xpose.msra.mxu0 0.0
    %869 = vmatprep.subr.mxu0 0.0
    %870 = vmatpush1.xpose.msra.mxu0 0.0
    %871 = vmatprep.subr.mxu0 0.0
    %872 = vmatpush1.xpose.msra.mxu0 0.0
    %873 = vmatprep.subr.mxu0 0.0
    %874 = vmatpush1.xpose.msra.mxu0 0.0
    %875 = vmatprep.subr.mxu0 0.0
    %876 = vmatpush1.xpose.msra.mxu0 0.0
    %877 = vmatprep.subr.mxu0 0.0
    %878 = vmatpush1.xpose.msra.mxu0 0.0
    %879 = vmatprep.subr.mxu0 0.0
    %880 = vmatpush1.xpose.msra.mxu0 0.0
    %881 = vmatprep.subr.mxu0 0.0
    %882 = vmatpush1.xpose.msra.mxu0 0.0
    %883 = vmatprep.subr.mxu0 0.0
    %884 = vmatpush1.xpose.msra.mxu0 0.0
    %885 = vmatprep.subr.mxu0 0.0
    %886 = vmatpush1.xpose.msra.mxu0 0.0
    %887 = vmatprep.subr.mxu0 0.0
    %888 = vmatpush1.xpose.msra.mxu0 0.0
    %889 = vmatprep.subr.mxu0 0.0
    %890 = vmatpush1.xpose.msra.mxu0 0.0
    %891 = vmatprep.subr.mxu0 0.0
    %892 = vmatpush1.xpose.msra.mxu0 0.0
    %893 = vmatprep.subr.mxu0 0.0
    %894 = vmatpush1.xpose.msra.mxu0 0.0
    %895 = vmatprep.subr.mxu0 0.0
    %896 = vmatpush1.xpose.msra.mxu0 0.0
    %897 = vmatprep.mubr.f32.mxu0 0.0
    %898 = vmatmul.mubr.f32.gmra.mrb[0].mxu0 %v829
    %v899 = vpop.f32.mrb[0].mxu0
    %v900 = vadd.f32 0.0, %v899
    %v901 = vpop.f32.mrb[0].mxu0
    %902 = vdwg.mxu0
    %v903 = vsel %vm409, %v900, -inf
    %904 = vmax.xlane.f32.xlu0 %v903
    %v905 = vpop.xlane.xlu0 %904
    %v906 = vsub.f32 %v900, %v905
    %v907 = vmul.f32 %v906, 1.442695
    %v908 = vpow.pop %v907
    %v909 = vsel %vm409, %v908, 0.0
    %910 = vadd.xlane.f32.xlu0 %v909
    %v911 = vpop.xlane.xlu0 %910
    %912 = vrot.lane.b32.xlu0 %v324, 80
    %v913 = vpop.permute.xlu0 %912
    %v916 = vsel %vm409, %v908, 0
    %918 = vmatprep.subr.mxu0 0.0
    %919 = vmatpush1.msra.mxu0 %v913
    %920 = vmatprep.subr.mxu0 0.0
    %921 = vmatpush1.msra.mxu0 0.0
    %922 = vmatprep.subr.mxu0 0.0
    %923 = vmatpush1.msra.mxu0 0.0
    %924 = vmatprep.subr.mxu0 0.0
    %925 = vmatpush1.msra.mxu0 0.0
    %926 = vmatprep.subr.mxu0 0.0
    %927 = vmatpush1.msra.mxu0 0.0
    %928 = vmatprep.subr.mxu0 0.0
    %929 = vmatpush1.msra.mxu0 0.0
    %930 = vmatprep.subr.mxu0 0.0
    %931 = vmatpush1.msra.mxu0 0.0
    %932 = vmatprep.subr.mxu0 0.0
    %933 = vmatpush1.msra.mxu0 0.0
    %934 = vmatprep.subr.mxu0 0.0
    %935 = vmatpush1.msra.mxu0 0.0
    %936 = vmatprep.subr.mxu0 0.0
    %937 = vmatpush1.msra.mxu0 0.0
    %938 = vmatprep.subr.mxu0 0.0
    %939 = vmatpush1.msra.mxu0 0.0
    %940 = vmatprep.subr.mxu0 0.0
    %941 = vmatpush1.msra.mxu0 0.0
    %942 = vmatprep.subr.mxu0 0.0
    %943 = vmatpush1.msra.mxu0 0.0
    %944 = vmatprep.subr.mxu0 0.0
    %945 = vmatpush1.msra.mxu0 0.0
    %946 = vmatprep.subr.mxu0 0.0
    %947 = vmatpush1.msra.mxu0 0.0
    %948 = vmatprep.subr.mxu0 0.0
    %949 = vmatpush1.msra.mxu0 0.0
    %950 = vmatprep.subr.mxu0 0.0
    %951 = vmatpush1.msra.mxu0 0.0
    %952 = vmatprep.subr.mxu0 0.0
    %953 = vmatpush1.msra.mxu0 0.0
    %954 = vmatprep.subr.mxu0 0.0
    %955 = vmatpush1.msra.mxu0 0.0
    %956 = vmatprep.subr.mxu0 0.0
    %957 = vmatpush1.msra.mxu0 0.0
    %958 = vmatprep.subr.mxu0 0.0
    %959 = vmatpush1.msra.mxu0 0.0
    %960 = vmatprep.subr.mxu0 0.0
    %961 = vmatpush1.msra.mxu0 0.0
    %962 = vmatprep.subr.mxu0 0.0
    %963 = vmatpush1.msra.mxu0 0.0
    %964 = vmatprep.subr.mxu0 0.0
    %965 = vmatpush1.msra.mxu0 0.0
    %966 = vmatprep.subr.mxu0 0.0
    %967 = vmatpush1.msra.mxu0 0.0
    %968 = vmatprep.subr.mxu0 0.0
    %969 = vmatpush1.msra.mxu0 0.0
    %970 = vmatprep.subr.mxu0 0.0
    %971 = vmatpush1.msra.mxu0 0.0
    %972 = vmatprep.subr.mxu0 0.0
    %973 = vmatpush1.msra.mxu0 0.0
    %974 = vmatprep.subr.mxu0 0.0
    %975 = vmatpush1.msra.mxu0 0.0
    %976 = vmatprep.subr.mxu0 0.0
    %977 = vmatpush1.msra.mxu0 0.0
    %978 = vmatprep.subr.mxu0 0.0
    %979 = vmatpush1.msra.mxu0 0.0
    %980 = vmatprep.subr.mxu0 0.0
    %981 = vmatpush1.msra.mxu0 0.0
    %982 = vmatprep.mubr.f32.mxu0 0.0
    %983 = vmatmul.mubr.f32.gmra.mrb[0].mxu0 %v916
    %v984 = vpop.f32.mrb[0].mxu0
    %v985 = vadd.f32 0.0, %v984
    %v986 = vpop.f32.mrb[0].mxu0
    %987 = vdwg.mxu0
    %v988 = vrcp.pop %v911
    %v989 = vmul.f32 %v985, %v988
    %991 = vrot.lane.b32.xlu0 %v659, 16
    %v992 = vpop.permute.xlu0 %991
    %995 = vrot.lane.b32.xlu0 %v824, 32
    %v996 = vpop.permute.xlu0 %995
    %999 = vrot.lane.b32.xlu0 %v989, 48
    %v1000 = vpop.permute.xlu0 %999
    %v1002 = vsel %vm332, %v493, %v992
    %v1003 = vsel %vm74, %v1002, %v996
    %vm1004 = vcmask 392192
    %v1005 = vsel %vm1004, %v1003, %v1000
    %v1007 = vsel %vm332, %v157, 0
    %v1010 = vsel %vm332, %v242, 0
    %1012 = vmatprep.subr.mxu0 0.0
    %1013 = vmatpush1.xpose.msra.mxu0 %v1010
    %1014 = vmatprep.subr.mxu0 0.0
    %1015 = vmatpush1.xpose.msra.mxu0 0.0
    %1016 = vmatprep.subr.mxu0 0.0
    %1017 = vmatpush1.xpose.msra.mxu0 0.0
    %1018 = vmatprep.subr.mxu0 0.0
    %1019 = vmatpush1.xpose.msra.mxu0 0.0
    %1020 = vmatprep.subr.mxu0 0.0
    %1021 = vmatpush1.xpose.msra.mxu0 0.0
    %1022 = vmatprep.subr.mxu0 0.0
    %1023 = vmatpush1.xpose.msra.mxu0 0.0
    %1024 = vmatprep.subr.mxu0 0.0
    %1025 = vmatpush1.xpose.msra.mxu0 0.0
    %1026 = vmatprep.subr.mxu0 0.0
    %1027 = vmatpush1.xpose.msra.mxu0 0.0
    %1028 = vmatprep.subr.mxu0 0.0
    %1029 = vmatpush1.xpose.msra.mxu0 0.0
    %1030 = vmatprep.subr.mxu0 0.0
    %1031 = vmatpush1.xpose.msra.mxu0 0.0
    %1032 = vmatprep.subr.mxu0 0.0
    %1033 = vmatpush1.xpose.msra.mxu0 0.0
    %1034 = vmatprep.subr.mxu0 0.0
    %1035 = vmatpush1.xpose.msra.mxu0 0.0
    %1036 = vmatprep.subr.mxu0 0.0
    %1037 = vmatpush1.xpose.msra.mxu0 0.0
    %1038 = vmatprep.subr.mxu0 0.0
    %1039 = vmatpush1.xpose.msra.mxu0 0.0
    %1040 = vmatprep.subr.mxu0 0.0
    %1041 = vmatpush1.xpose.msra.mxu0 0.0
    %1042 = vmatprep.subr.mxu0 0.0
    %1043 = vmatpush1.xpose.msra.mxu0 0.0
    %1044 = vmatprep.subr.mxu0 0.0
    %1045 = vmatpush1.xpose.msra.mxu0 0.0
    %1046 = vmatprep.subr.mxu0 0.0
    %1047 = vmatpush1.xpose.msra.mxu0 0.0
    %1048 = vmatprep.subr.mxu0 0.0
    %1049 = vmatpush1.xpose.msra.mxu0 0.0
    %1050 = vmatprep.subr.mxu0 0.0
    %1051 = vmatpush1.xpose.msra.mxu0 0.0
    %1052 = vmatprep.subr.mxu0 0.0
    %1053 = vmatpush1.xpose.msra.mxu0 0.0
    %1054 = vmatprep.subr.mxu0 0.0
    %1055 = vmatpush1.xpose.msra.mxu0 0.0
    %1056 = vmatprep.subr.mxu0 0.0
    %1057 = vmatpush1.xpose.msra.mxu0 0.0
    %1058 = vmatprep.subr.mxu0 0.0
    %1059 = vmatpush1.xpose.msra.mxu0 0.0
    %1060 = vmatprep.subr.mxu0 0.0
    %1061 = vmatpush1.xpose.msra.mxu0 0.0
    %1062 = vmatprep.subr.mxu0 0.0
    %1063 = vmatpush1.xpose.msra.mxu0 0.0
    %1064 = vmatprep.subr.mxu0 0.0
    %1065 = vmatpush1.xpose.msra.mxu0 0.0
    %1066 = vmatprep.subr.mxu0 0.0
    %1067 = vmatpush1.xpose.msra.mxu0 0.0
    %1068 = vmatprep.subr.mxu0 0.0
    %1069 = vmatpush1.xpose.msra.mxu0 0.0
    %1070 = vmatprep.subr.mxu0 0.0
    %1071 = vmatpush1.xpose.msra.mxu0 0.0
    %1072 = vmatprep.subr.mxu0 0.0
    %1073 = vmatpush1.xpose.msra.mxu0 0.0
    %1074 = vmatprep.subr.mxu0 0.0
    %1075 = vmatpush1.xpose.msra.mxu0 0.0
    %1076 = vmatprep.mubr.f32.mxu0 0.0
    %1077 = vmatmul.mubr.f32.gmra.mrb[0].mxu0 %v1007
    %v1078 = vpop.f32.mrb[0].mxu0
    %v1079 = vadd.f32 0.0, %v1078
    %v1080 = vpop.f32.mrb[0].mxu0
    %1081 = vdwg.mxu0
    %v1082 = vsel %vm409, %v1079, -inf
    %1083 = vmax.xlane.f32.xlu0 %v1082
    %v1084 = vpop.xlane.xlu0 %1083
    %v1085 = vsub.f32 %v1079, %v1084
    %v1086 = vmul.f32 %v1085, 1.442695
    %v1087 = vpow.pop %v1086
    %v1088 = vsel %vm409, %v1087, 0.0
    %1089 = vadd.xlane.f32.xlu0 %v1088
    %v1090 = vpop.xlane.xlu0 %1089
    %v1092 = vsel %vm409, %v1087, 0
    %1094 = vmatprep.subr.mxu0 0.0
    %1095 = vmatpush1.msra.mxu0 %v329
    %1096 = vmatprep.subr.mxu0 0.0
    %1097 = vmatpush1.msra.mxu0 0.0
    %1098 = vmatprep.subr.mxu0 0.0
    %1099 = vmatpush1.msra.mxu0 0.0
    %1100 = vmatprep.subr.mxu0 0.0
    %1101 = vmatpush1.msra.mxu0 0.0
    %1102 = vmatprep.subr.mxu0 0.0
    %1103 = vmatpush1.msra.mxu0 0.0
    %1104 = vmatprep.subr.mxu0 0.0
    %1105 = vmatpush1.msra.mxu0 0.0
    %1106 = vmatprep.subr.mxu0 0.0
    %1107 = vmatpush1.msra.mxu0 0.0
    %1108 = vmatprep.subr.mxu0 0.0
    %1109 = vmatpush1.msra.mxu0 0.0
    %1110 = vmatprep.subr.mxu0 0.0
    %1111 = vmatpush1.msra.mxu0 0.0
    %1112 = vmatprep.subr.mxu0 0.0
    %1113 = vmatpush1.msra.mxu0 0.0
    %1114 = vmatprep.subr.mxu0 0.0
    %1115 = vmatpush1.msra.mxu0 0.0
    %1116 = vmatprep.subr.mxu0 0.0
    %1117 = vmatpush1.msra.mxu0 0.0
    %1118 = vmatprep.subr.mxu0 0.0
    %1119 = vmatpush1.msra.mxu0 0.0
    %1120 = vmatprep.subr.mxu0 0.0
    %1121 = vmatpush1.msra.mxu0 0.0
    %1122 = vmatprep.subr.mxu0 0.0
    %1123 = vmatpush1.msra.mxu0 0.0
    %1124 = vmatprep.subr.mxu0 0.0
    %1125 = vmatpush1.msra.mxu0 0.0
    %1126 = vmatprep.subr.mxu0 0.0
    %1127 = vmatpush1.msra.mxu0 0.0
    %1128 = vmatprep.subr.mxu0 0.0
    %1129 = vmatpush1.msra.mxu0 0.0
    %1130 = vmatprep.subr.mxu0 0.0
    %1131 = vmatpush1.msra.mxu0 0.0
    %1132 = vmatprep.subr.mxu0 0.0
    %1133 = vmatpush1.msra.mxu0 0.0
    %1134 = vmatprep.subr.mxu0 0.0
    %1135 = vmatpush1.msra.mxu0 0.0
    %1136 = vmatprep.subr.mxu0 0.0
    %1137 = vmatpush1.msra.mxu0 0.0
    %1138 = vmatprep.subr.mxu0 0.0
    %1139 = vmatpush1.msra.mxu0 0.0
    %1140 = vmatprep.subr.mxu0 0.0
    %1141 = vmatpush1.msra.mxu0 0.0
    %1142 = vmatprep.subr.mxu0 0.0
    %1143 = vmatpush1.msra.mxu0 0.0
    %1144 = vmatprep.subr.mxu0 0.0
    %1145 = vmatpush1.msra.mxu0 0.0
    %1146 = vmatprep.subr.mxu0 0.0
    %1147 = vmatpush1.msra.mxu0 0.0
    %1148 = vmatprep.subr.mxu0 0.0
    %1149 = vmatpush1.msra.mxu0 0.0
    %1150 = vmatprep.subr.mxu0 0.0
    %1151 = vmatpush1.msra.mxu0 0.0
    %1152 = vmatprep.subr.mxu0 0.0
    %1153 = vmatpush1.msra.mxu0 0.0
    %1154 = vmatprep.subr.mxu0 0.0
    %1155 = vmatpush1.msra.mxu0 0.0
    %1156 = vmatprep.subr.mxu0 0.0
    %1157 = vmatpush1.msra.mxu0 0.0
    %1158 = vmatprep.mubr.f32.mxu0 0.0
    %1159 = vmatmul.mubr.f32.gmra.mrb[0].mxu0 %v1092
    %v1160 = vpop.f32.mrb[0].mxu0
    %v1161 = vadd.f32 0.0, %v1160
    %v1162 = vpop.f32.mrb[0].mxu0
    %1163 = vdwg.mxu0
    %v1164 = vrcp.pop %v1090
    %v1165 = vmul.f32 %v1161, %v1164
    %1166 = vrot.lane.b32.xlu0 %v157, 112
    %v1167 = vpop.permute.xlu0 %1166
    %1168 = vrot.lane.b32.xlu0 %v242, 112
    %v1169 = vpop.permute.xlu0 %1168
    %v1170 = vsel %vm332, %v1167, 0
    %v1172 = vsel %vm332, %v1169, 0
    %1174 = vmatprep.subr.mxu0 0.0
    %1175 = vmatpush1.xpose.msra.mxu0 %v1172
    %1176 = vmatprep.subr.mxu0 0.0
    %1177 = vmatpush1.xpose.msra.mxu0 0.0
    %1178 = vmatprep.subr.mxu0 0.0
    %1179 = vmatpush1.xpose.msra.mxu0 0.0
    %1180 = vmatprep.subr.mxu0 0.0
    %1181 = vmatpush1.xpose.msra.mxu0 0.0
    %1182 = vmatprep.subr.mxu0 0.0
    %1183 = vmatpush1.xpose.msra.mxu0 0.0
    %1184 = vmatprep.subr.mxu0 0.0
    %1185 = vmatpush1.xpose.msra.mxu0 0.0
    %1186 = vmatprep.subr.mxu0 0.0
    %1187 = vmatpush1.xpose.msra.mxu0 0.0
    %1188 = vmatprep.subr.mxu0 0.0
    %1189 = vmatpush1.xpose.msra.mxu0 0.0
    %1190 = vmatprep.subr.mxu0 0.0
    %1191 = vmatpush1.xpose.msra.mxu0 0.0
    %1192 = vmatprep.subr.mxu0 0.0
    %1193 = vmatpush1.xpose.msra.mxu0 0.0
    %1194 = vmatprep.subr.mxu0 0.0
    %1195 = vmatpush1.xpose.msra.mxu0 0.0
    %1196 = vmatprep.subr.mxu0 0.0
    %1197 = vmatpush1.xpose.msra.mxu0 0.0
    %1198 = vmatprep.subr.mxu0 0.0
    %1199 = vmatpush1.xpose.msra.mxu0 0.0
    %1200 = vmatprep.subr.mxu0 0.0
    %1201 = vmatpush1.xpose.msra.mxu0 0.0
    %1202 = vmatprep.subr.mxu0 0.0
    %1203 = vmatpush1.xpose.msra.mxu0 0.0
    %1204 = vmatprep.subr.mxu0 0.0
    %1205 = vmatpush1.xpose.msra.mxu0 0.0
    %1206 = vmatprep.subr.mxu0 0.0
    %1207 = vmatpush1.xpose.msra.mxu0 0.0
    %1208 = vmatprep.subr.mxu0 0.0
    %1209 = vmatpush1.xpose.msra.mxu0 0.0
    %1210 = vmatprep.subr.mxu0 0.0
    %1211 = vmatpush1.xpose.msra.mxu0 0.0
    %1212 = vmatprep.subr.mxu0 0.0
    %1213 = vmatpush1.xpose.msra.mxu0 0.0
    %1214 = vmatprep.subr.mxu0 0.0
    %1215 = vmatpush1.xpose.msra.mxu0 0.0
    %1216 = vmatprep.subr.mxu0 0.0
    %1217 = vmatpush1.xpose.msra.mxu0 0.0
    %1218 = vmatprep.subr.mxu0 0.0
    %1219 = vmatpush1.xpose.msra.mxu0 0.0
    %1220 = vmatprep.subr.mxu0 0.0
    %1221 = vmatpush1.xpose.msra.mxu0 0.0
    %1222 = vmatprep.subr.mxu0 0.0
    %1223 = vmatpush1.xpose.msra.mxu0 0.0
    %1224 = vmatprep.subr.mxu0 0.0
    %1225 = vmatpush1.xpose.msra.mxu0 0.0
    %1226 = vmatprep.subr.mxu0 0.0
    %1227 = vmatpush1.xpose.msra.mxu0 0.0
    %1228 = vmatprep.subr.mxu0 0.0
    %1229 = vmatpush1.xpose.msra.mxu0 0.0
    %1230 = vmatprep.subr.mxu0 0.0
    %1231 = vmatpush1.xpose.msra.mxu0 0.0
    %1232 = vmatprep.subr.mxu0 0.0
    %1233 = vmatpush1.xpose.msra.mxu0 0.0
    %1234 = vmatprep.subr.mxu0 0.0
    %1235 = vmatpush1.xpose.msra.mxu0 0.0
    %1236 = vmatprep.subr.mxu0 0.0
    %1237 = vmatpush1.xpose.msra.mxu0 0.0
    %1238 = vmatprep.mubr.f32.mxu0 0.0
    %1239 = vmatmul.mubr.f32.gmra.mrb[0].mxu0 %v1170
    %v1240 = vpop.f32.mrb[0].mxu0
    %v1241 = vadd.f32 0.0, %v1240
    %v1242 = vpop.f32.mrb[0].mxu0
    %1243 = vdwg.mxu0
    %v1244 = vsel %vm409, %v1241, -inf
    %1245 = vmax.xlane.f32.xlu0 %v1244
    %v1246 = vpop.xlane.xlu0 %1245
    %v1247 = vsub.f32 %v1241, %v1246
    %v1248 = vmul.f32 %v1247, 1.442695
    %v1249 = vpow.pop %v1248
    %v1250 = vsel %vm409, %v1249, 0.0
    %1251 = vadd.xlane.f32.xlu0 %v1250
    %v1252 = vpop.xlane.xlu0 %1251
    %1254 = vrot.lane.b32.xlu0 %v329, 112
    %v1255 = vpop.permute.xlu0 %1254
    %v1258 = vsel %vm409, %v1249, 0
    %1260 = vmatprep.subr.mxu0 0.0
    %1261 = vmatpush1.msra.mxu0 %v1255
    %1262 = vmatprep.subr.mxu0 0.0
    %1263 = vmatpush1.msra.mxu0 0.0
    %1264 = vmatprep.subr.mxu0 0.0
    %1265 = vmatpush1.msra.mxu0 0.0
    %1266 = vmatprep.subr.mxu0 0.0
    %1267 = vmatpush1.msra.mxu0 0.0
    %1268 = vmatprep.subr.mxu0 0.0
    %1269 = vmatpush1.msra.mxu0 0.0
    %1270 = vmatprep.subr.mxu0 0.0
    %1271 = vmatpush1.msra.mxu0 0.0
    %1272 = vmatprep.subr.mxu0 0.0
    %1273 = vmatpush1.msra.mxu0 0.0
    %1274 = vmatprep.subr.mxu0 0.0
    %1275 = vmatpush1.msra.mxu0 0.0
    %1276 = vmatprep.subr.mxu0 0.0
    %1277 = vmatpush1.msra.mxu0 0.0
    %1278 = vmatprep.subr.mxu0 0.0
    %1279 = vmatpush1.msra.mxu0 0.0
    %1280 = vmatprep.subr.mxu0 0.0
    %1281 = vmatpush1.msra.mxu0 0.0
    %1282 = vmatprep.subr.mxu0 0.0
    %1283 = vmatpush1.msra.mxu0 0.0
    %1284 = vmatprep.subr.mxu0 0.0
    %1285 = vmatpush1.msra.mxu0 0.0
    %1286 = vmatprep.subr.mxu0 0.0
    %1287 = vmatpush1.msra.mxu0 0.0
    %1288 = vmatprep.subr.mxu0 0.0
    %1289 = vmatpush1.msra.mxu0 0.0
    %1290 = vmatprep.subr.mxu0 0.0
    %1291 = vmatpush1.msra.mxu0 0.0
    %1292 = vmatprep.subr.mxu0 0.0
    %1293 = vmatpush1.msra.mxu0 0.0
    %1294 = vmatprep.subr.mxu0 0.0
    %1295 = vmatpush1.msra.mxu0 0.0
    %1296 = vmatprep.subr.mxu0 0.0
    %1297 = vmatpush1.msra.mxu0 0.0
    %1298 = vmatprep.subr.mxu0 0.0
    %1299 = vmatpush1.msra.mxu0 0.0
    %1300 = vmatprep.subr.mxu0 0.0
    %1301 = vmatpush1.msra.mxu0 0.0
    %1302 = vmatprep.subr.mxu0 0.0
    %1303 = vmatpush1.msra.mxu0 0.0
    %1304 = vmatprep.subr.mxu0 0.0
    %1305 = vmatpush1.msra.mxu0 0.0
    %1306 = vmatprep.subr.mxu0 0.0
    %1307 = vmatpush1.msra.mxu0 0.0
    %1308 = vmatprep.subr.mxu0 0.0
    %1309 = vmatpush1.msra.mxu0 0.0
    %1310 = vmatprep.subr.mxu0 0.0
    %1311 = vmatpush1.msra.mxu0 0.0
    %1312 = vmatprep.subr.mxu0 0.0
    %1313 = vmatpush1.msra.mxu0 0.0
    %1314 = vmatprep.subr.mxu0 0.0
    %1315 = vmatpush1.msra.mxu0 0.0
    %1316 = vmatprep.subr.mxu0 0.0
    %1317 = vmatpush1.msra.mxu0 0.0
    %1318 = vmatprep.subr.mxu0 0.0
    %1319 = vmatpush1.msra.mxu0 0.0
    %1320 = vmatprep.subr.mxu0 0.0
    %1321 = vmatpush1.msra.mxu0 0.0
    %1322 = vmatprep.subr.mxu0 0.0
    %1323 = vmatpush1.msra.mxu0 0.0
    %1324 = vmatprep.mubr.f32.mxu0 0.0
    %1325 = vmatmul.mubr.f32.gmra.mrb[0].mxu0 %v1258
    %v1326 = vpop.f32.mrb[0].mxu0
    %v1327 = vadd.f32 0.0, %v1326
    %v1328 = vpop.f32.mrb[0].mxu0
    %1329 = vdwg.mxu0
    %v1330 = vrcp.pop %v1252
    %v1331 = vmul.f32 %v1327, %v1330
    %1332 = vrot.lane.b32.xlu0 %v157, 96
    %v1333 = vpop.permute.xlu0 %1332
    %1334 = vrot.lane.b32.xlu0 %v242, 96
    %v1335 = vpop.permute.xlu0 %1334
    %v1336 = vsel %vm332, %v1333, 0
    %v1338 = vsel %vm332, %v1335, 0
    %1340 = vmatprep.subr.mxu0 0.0
    %1341 = vmatpush1.xpose.msra.mxu0 %v1338
    %1342 = vmatprep.subr.mxu0 0.0
    %1343 = vmatpush1.xpose.msra.mxu0 0.0
    %1344 = vmatprep.subr.mxu0 0.0
    %1345 = vmatpush1.xpose.msra.mxu0 0.0
    %1346 = vmatprep.subr.mxu0 0.0
    %1347 = vmatpush1.xpose.msra.mxu0 0.0
    %1348 = vmatprep.subr.mxu0 0.0
    %1349 = vmatpush1.xpose.msra.mxu0 0.0
    %1350 = vmatprep.subr.mxu0 0.0
    %1351 = vmatpush1.xpose.msra.mxu0 0.0
    %1352 = vmatprep.subr.mxu0 0.0
    %1353 = vmatpush1.xpose.msra.mxu0 0.0
    %1354 = vmatprep.subr.mxu0 0.0
    %1355 = vmatpush1.xpose.msra.mxu0 0.0
    %1356 = vmatprep.subr.mxu0 0.0
    %1357 = vmatpush1.xpose.msra.mxu0 0.0
    %1358 = vmatprep.subr.mxu0 0.0
    %1359 = vmatpush1.xpose.msra.mxu0 0.0
    %1360 = vmatprep.subr.mxu0 0.0
    %1361 = vmatpush1.xpose.msra.mxu0 0.0
    %1362 = vmatprep.subr.mxu0 0.0
    %1363 = vmatpush1.xpose.msra.mxu0 0.0
    %1364 = vmatprep.subr.mxu0 0.0
    %1365 = vmatpush1.xpose.msra.mxu0 0.0
    %1366 = vmatprep.subr.mxu0 0.0
    %1367 = vmatpush1.xpose.msra.mxu0 0.0
    %1368 = vmatprep.subr.mxu0 0.0
    %1369 = vmatpush1.xpose.msra.mxu0 0.0
    %1370 = vmatprep.subr.mxu0 0.0
    %1371 = vmatpush1.xpose.msra.mxu0 0.0
    %1372 = vmatprep.subr.mxu0 0.0
    %1373 = vmatpush1.xpose.msra.mxu0 0.0
    %1374 = vmatprep.subr.mxu0 0.0
    %1375 = vmatpush1.xpose.msra.mxu0 0.0
    %1376 = vmatprep.subr.mxu0 0.0
    %1377 = vmatpush1.xpose.msra.mxu0 0.0
    %1378 = vmatprep.subr.mxu0 0.0
    %1379 = vmatpush1.xpose.msra.mxu0 0.0
    %1380 = vmatprep.subr.mxu0 0.0
    %1381 = vmatpush1.xpose.msra.mxu0 0.0
    %1382 = vmatprep.subr.mxu0 0.0
    %1383 = vmatpush1.xpose.msra.mxu0 0.0
    %1384 = vmatprep.subr.mxu0 0.0
    %1385 = vmatpush1.xpose.msra.mxu0 0.0
    %1386 = vmatprep.subr.mxu0 0.0
    %1387 = vmatpush1.xpose.msra.mxu0 0.0
    %1388 = vmatprep.subr.mxu0 0.0
    %1389 = vmatpush1.xpose.msra.mxu0 0.0
    %1390 = vmatprep.subr.mxu0 0.0
    %1391 = vmatpush1.xpose.msra.mxu0 0.0
    %1392 = vmatprep.subr.mxu0 0.0
    %1393 = vmatpush1.xpose.msra.mxu0 0.0
    %1394 = vmatprep.subr.mxu0 0.0
    %1395 = vmatpush1.xpose.msra.mxu0 0.0
    %1396 = vmatprep.subr.mxu0 0.0
    %1397 = vmatpush1.xpose.msra.mxu0 0.0
    %1398 = vmatprep.subr.mxu0 0.0
    %1399 = vmatpush1.xpose.msra.mxu0 0.0
    %1400 = vmatprep.subr.mxu0 0.0
    %1401 = vmatpush1.xpose.msra.mxu0 0.0
    %1402 = vmatprep.subr.mxu0 0.0
    %1403 = vmatpush1.xpose.msra.mxu0 0.0
    %1404 = vmatprep.mubr.f32.mxu0 0.0
    %1405 = vmatmul.mubr.f32.gmra.mrb[0].mxu0 %v1336
    %v1406 = vpop.f32.mrb[0].mxu0
    %v1407 = vadd.f32 0.0, %v1406
    %v1408 = vpop.f32.mrb[0].mxu0
    %1409 = vdwg.mxu0
    %v1410 = vsel %vm409, %v1407, -inf
    %1411 = vmax.xlane.f32.xlu0 %v1410
    %v1412 = vpop.xlane.xlu0 %1411
    %v1413 = vsub.f32 %v1407, %v1412
    %v1414 = vmul.f32 %v1413, 1.442695
    %v1415 = vpow.pop %v1414
    %v1416 = vsel %vm409, %v1415, 0.0
    %1417 = vadd.xlane.f32.xlu0 %v1416
    %v1418 = vpop.xlane.xlu0 %1417
    %1419 = vrot.lane.b32.xlu0 %v329, 96
    %v1420 = vpop.permute.xlu0 %1419
    %v1423 = vsel %vm409, %v1415, 0
    %1425 = vmatprep.subr.mxu0 0.0
    %1426 = vmatpush1.msra.mxu0 %v1420
    %1427 = vmatprep.subr.mxu0 0.0
    %1428 = vmatpush1.msra.mxu0 0.0
    %1429 = vmatprep.subr.mxu0 0.0
    %1430 = vmatpush1.msra.mxu0 0.0
    %1431 = vmatprep.subr.mxu0 0.0
    %1432 = vmatpush1.msra.mxu0 0.0
    %1433 = vmatprep.subr.mxu0 0.0
    %1434 = vmatpush1.msra.mxu0 0.0
    %1435 = vmatprep.subr.mxu0 0.0
    %1436 = vmatpush1.msra.mxu0 0.0
    %1437 = vmatprep.subr.mxu0 0.0
    %1438 = vmatpush1.msra.mxu0 0.0
    %1439 = vmatprep.subr.mxu0 0.0
    %1440 = vmatpush1.msra.mxu0 0.0
    %1441 = vmatprep.subr.mxu0 0.0
    %1442 = vmatpush1.msra.mxu0 0.0
    %1443 = vmatprep.subr.mxu0 0.0
    %1444 = vmatpush1.msra.mxu0 0.0
    %1445 = vmatprep.subr.mxu0 0.0
    %1446 = vmatpush1.msra.mxu0 0.0
    %1447 = vmatprep.subr.mxu0 0.0
    %1448 = vmatpush1.msra.mxu0 0.0
    %1449 = vmatprep.subr.mxu0 0.0
    %1450 = vmatpush1.msra.mxu0 0.0
    %1451 = vmatprep.subr.mxu0 0.0
    %1452 = vmatpush1.msra.mxu0 0.0
    %1453 = vmatprep.subr.mxu0 0.0
    %1454 = vmatpush1.msra.mxu0 0.0
    %1455 = vmatprep.subr.mxu0 0.0
    %1456 = vmatpush1.msra.mxu0 0.0
    %1457 = vmatprep.subr.mxu0 0.0
    %1458 = vmatpush1.msra.mxu0 0.0
    %1459 = vmatprep.subr.mxu0 0.0
    %1460 = vmatpush1.msra.mxu0 0.0
    %1461 = vmatprep.subr.mxu0 0.0
    %1462 = vmatpush1.msra.mxu0 0.0
    %1463 = vmatprep.subr.mxu0 0.0
    %1464 = vmatpush1.msra.mxu0 0.0
    %1465 = vmatprep.subr.mxu0 0.0
    %1466 = vmatpush1.msra.mxu0 0.0
    %1467 = vmatprep.subr.mxu0 0.0
    %1468 = vmatpush1.msra.mxu0 0.0
    %1469 = vmatprep.subr.mxu0 0.0
    %1470 = vmatpush1.msra.mxu0 0.0
    %1471 = vmatprep.subr.mxu0 0.0
    %1472 = vmatpush1.msra.mxu0 0.0
    %1473 = vmatprep.subr.mxu0 0.0
    %1474 = vmatpush1.msra.mxu0 0.0
    %1475 = vmatprep.subr.mxu0 0.0
    %1476 = vmatpush1.msra.mxu0 0.0
    %1477 = vmatprep.subr.mxu0 0.0
    %1478 = vmatpush1.msra.mxu0 0.0
    %1479 = vmatprep.subr.mxu0 0.0
    %1480 = vmatpush1.msra.mxu0 0.0
    %1481 = vmatprep.subr.mxu0 0.0
    %1482 = vmatpush1.msra.mxu0 0.0
    %1483 = vmatprep.subr.mxu0 0.0
    %1484 = vmatpush1.msra.mxu0 0.0
    %1485 = vmatprep.subr.mxu0 0.0
    %1486 = vmatpush1.msra.mxu0 0.0
    %1487 = vmatprep.subr.mxu0 0.0
    %1488 = vmatpush1.msra.mxu0 0.0
    %1489 = vmatprep.mubr.f32.mxu0 0.0
    %1490 = vmatmul.mubr.f32.gmra.mrb[0].mxu0 %v1423
    %v1491 = vpop.f32.mrb[0].mxu0
    %v1492 = vadd.f32 0.0, %v1491
    %v1493 = vpop.f32.mrb[0].mxu0
    %1494 = vdwg.mxu0
    %v1495 = vrcp.pop %v1418
    %v1496 = vmul.f32 %v1492, %v1495
    %1497 = vrot.lane.b32.xlu0 %v157, 80
    %v1498 = vpop.permute.xlu0 %1497
    %1499 = vrot.lane.b32.xlu0 %v242, 80
    %v1500 = vpop.permute.xlu0 %1499
    %v1501 = vsel %vm332, %v1498, 0
    %v1503 = vsel %vm332, %v1500, 0
    %1505 = vmatprep.subr.mxu0 0.0
    %1506 = vmatpush1.xpose.msra.mxu0 %v1503
    %1507 = vmatprep.subr.mxu0 0.0
    %1508 = vmatpush1.xpose.msra.mxu0 0.0
    %1509 = vmatprep.subr.mxu0 0.0
    %1510 = vmatpush1.xpose.msra.mxu0 0.0
    %1511 = vmatprep.subr.mxu0 0.0
    %1512 = vmatpush1.xpose.msra.mxu0 0.0
    %1513 = vmatprep.subr.mxu0 0.0
    %1514 = vmatpush1.xpose.msra.mxu0 0.0
    %1515 = vmatprep.subr.mxu0 0.0
    %1516 = vmatpush1.xpose.msra.mxu0 0.0
    %1517 = vmatprep.subr.mxu0 0.0
    %1518 = vmatpush1.xpose.msra.mxu0 0.0
    %1519 = vmatprep.subr.mxu0 0.0
    %1520 = vmatpush1.xpose.msra.mxu0 0.0
    %1521 = vmatprep.subr.mxu0 0.0
    %1522 = vmatpush1.xpose.msra.mxu0 0.0
    %1523 = vmatprep.subr.mxu0 0.0
    %1524 = vmatpush1.xpose.msra.mxu0 0.0
    %1525 = vmatprep.subr.mxu0 0.0
    %1526 = vmatpush1.xpose.msra.mxu0 0.0
    %1527 = vmatprep.subr.mxu0 0.0
    %1528 = vmatpush1.xpose.msra.mxu0 0.0
    %1529 = vmatprep.subr.mxu0 0.0
    %1530 = vmatpush1.xpose.msra.mxu0 0.0
    %1531 = vmatprep.subr.mxu0 0.0
    %1532 = vmatpush1.xpose.msra.mxu0 0.0
    %1533 = vmatprep.subr.mxu0 0.0
    %1534 = vmatpush1.xpose.msra.mxu0 0.0
    %1535 = vmatprep.subr.mxu0 0.0
    %1536 = vmatpush1.xpose.msra.mxu0 0.0
    %1537 = vmatprep.subr.mxu0 0.0
    %1538 = vmatpush1.xpose.msra.mxu0 0.0
    %1539 = vmatprep.subr.mxu0 0.0
    %1540 = vmatpush1.xpose.msra.mxu0 0.0
    %1541 = vmatprep.subr.mxu0 0.0
    %1542 = vmatpush1.xpose.msra.mxu0 0.0
    %1543 = vmatprep.subr.mxu0 0.0
    %1544 = vmatpush1.xpose.msra.mxu0 0.0
    %1545 = vmatprep.subr.mxu0 0.0
    %1546 = vmatpush1.xpose.msra.mxu0 0.0
    %1547 = vmatprep.subr.mxu0 0.0
    %1548 = vmatpush1.xpose.msra.mxu0 0.0
    %1549 = vmatprep.subr.mxu0 0.0
    %1550 = vmatpush1.xpose.msra.mxu0 0.0
    %1551 = vmatprep.subr.mxu0 0.0
    %1552 = vmatpush1.xpose.msra.mxu0 0.0
    %1553 = vmatprep.subr.mxu0 0.0
    %1554 = vmatpush1.xpose.msra.mxu0 0.0
    %1555 = vmatprep.subr.mxu0 0.0
    %1556 = vmatpush1.xpose.msra.mxu0 0.0
    %1557 = vmatprep.subr.mxu0 0.0
    %1558 = vmatpush1.xpose.msra.mxu0 0.0
    %1559 = vmatprep.subr.mxu0 0.0
    %1560 = vmatpush1.xpose.msra.mxu0 0.0
    %1561 = vmatprep.subr.mxu0 0.0
    %1562 = vmatpush1.xpose.msra.mxu0 0.0
    %1563 = vmatprep.subr.mxu0 0.0
    %1564 = vmatpush1.xpose.msra.mxu0 0.0
    %1565 = vmatprep.subr.mxu0 0.0
    %1566 = vmatpush1.xpose.msra.mxu0 0.0
    %1567 = vmatprep.subr.mxu0 0.0
    %1568 = vmatpush1.xpose.msra.mxu0 0.0
    %1569 = vmatprep.mubr.f32.mxu0 0.0
    %1570 = vmatmul.mubr.f32.gmra.mrb[0].mxu0 %v1501
    %v1571 = vpop.f32.mrb[0].mxu0
    %v1572 = vadd.f32 0.0, %v1571
    %v1573 = vpop.f32.mrb[0].mxu0
    %1574 = vdwg.mxu0
    %v1575 = vsel %vm409, %v1572, -inf
    %1576 = vmax.xlane.f32.xlu0 %v1575
    %v1577 = vpop.xlane.xlu0 %1576
    %v1578 = vsub.f32 %v1572, %v1577
    %v1579 = vmul.f32 %v1578, 1.442695
    %v1580 = vpow.pop %v1579
    %v1581 = vsel %vm409, %v1580, 0.0
    %1582 = vadd.xlane.f32.xlu0 %v1581
    %v1583 = vpop.xlane.xlu0 %1582
    %1584 = vrot.lane.b32.xlu0 %v329, 80
    %v1585 = vpop.permute.xlu0 %1584
    %v1588 = vsel %vm409, %v1580, 0
    %1590 = vmatprep.subr.mxu0 0.0
    %1591 = vmatpush1.msra.mxu0 %v1585
    %1592 = vmatprep.subr.mxu0 0.0
    %1593 = vmatpush1.msra.mxu0 0.0
    %1594 = vmatprep.subr.mxu0 0.0
    %1595 = vmatpush1.msra.mxu0 0.0
    %1596 = vmatprep.subr.mxu0 0.0
    %1597 = vmatpush1.msra.mxu0 0.0
    %1598 = vmatprep.subr.mxu0 0.0
    %1599 = vmatpush1.msra.mxu0 0.0
    %1600 = vmatprep.subr.mxu0 0.0
    %1601 = vmatpush1.msra.mxu0 0.0
    %1602 = vmatprep.subr.mxu0 0.0
    %1603 = vmatpush1.msra.mxu0 0.0
    %1604 = vmatprep.subr.mxu0 0.0
    %1605 = vmatpush1.msra.mxu0 0.0
    %1606 = vmatprep.subr.mxu0 0.0
    %1607 = vmatpush1.msra.mxu0 0.0
    %1608 = vmatprep.subr.mxu0 0.0
    %1609 = vmatpush1.msra.mxu0 0.0
    %1610 = vmatprep.subr.mxu0 0.0
    %1611 = vmatpush1.msra.mxu0 0.0
    %1612 = vmatprep.subr.mxu0 0.0
    %1613 = vmatpush1.msra.mxu0 0.0
    %1614 = vmatprep.subr.mxu0 0.0
    %1615 = vmatpush1.msra.mxu0 0.0
    %1616 = vmatprep.subr.mxu0 0.0
    %1617 = vmatpush1.msra.mxu0 0.0
    %1618 = vmatprep.subr.mxu0 0.0
    %1619 = vmatpush1.msra.mxu0 0.0
    %1620 = vmatprep.subr.mxu0 0.0
    %1621 = vmatpush1.msra.mxu0 0.0
    %1622 = vmatprep.subr.mxu0 0.0
    %1623 = vmatpush1.msra.mxu0 0.0
    %1624 = vmatprep.subr.mxu0 0.0
    %1625 = vmatpush1.msra.mxu0 0.0
    %1626 = vmatprep.subr.mxu0 0.0
    %1627 = vmatpush1.msra.mxu0 0.0
    %1628 = vmatprep.subr.mxu0 0.0
    %1629 = vmatpush1.msra.mxu0 0.0
    %1630 = vmatprep.subr.mxu0 0.0
    %1631 = vmatpush1.msra.mxu0 0.0
    %1632 = vmatprep.subr.mxu0 0.0
    %1633 = vmatpush1.msra.mxu0 0.0
    %1634 = vmatprep.subr.mxu0 0.0
    %1635 = vmatpush1.msra.mxu0 0.0
    %1636 = vmatprep.subr.mxu0 0.0
    %1637 = vmatpush1.msra.mxu0 0.0
    %1638 = vmatprep.subr.mxu0 0.0
    %1639 = vmatpush1.msra.mxu0 0.0
    %1640 = vmatprep.subr.mxu0 0.0
    %1641 = vmatpush1.msra.mxu0 0.0
    %1642 = vmatprep.subr.mxu0 0.0
    %1643 = vmatpush1.msra.mxu0 0.0
    %1644 = vmatprep.subr.mxu0 0.0
    %1645 = vmatpush1.msra.mxu0 0.0
    %1646 = vmatprep.subr.mxu0 0.0
    %1647 = vmatpush1.msra.mxu0 0.0
    %1648 = vmatprep.subr.mxu0 0.0
    %1649 = vmatpush1.msra.mxu0 0.0
    %1650 = vmatprep.subr.mxu0 0.0
    %1651 = vmatpush1.msra.mxu0 0.0
    %1652 = vmatprep.subr.mxu0 0.0
    %1653 = vmatpush1.msra.mxu0 0.0
    %1654 = vmatprep.mubr.f32.mxu0 0.0
    %1655 = vmatmul.mubr.f32.gmra.mrb[0].mxu0 %v1588
    %v1656 = vpop.f32.mrb[0].mxu0
    %v1657 = vadd.f32 0.0, %v1656
    %v1658 = vpop.f32.mrb[0].mxu0
    %1659 = vdwg.mxu0
    %v1660 = vrcp.pop %v1583
    %v1661 = vmul.f32 %v1657, %v1660
    %1663 = vrot.lane.b32.xlu0 %v1331, 16
    %v1664 = vpop.permute.xlu0 %1663
    %1667 = vrot.lane.b32.xlu0 %v1496, 32
    %v1668 = vpop.permute.xlu0 %1667
    %1671 = vrot.lane.b32.xlu0 %v1661, 48
    %v1672 = vpop.permute.xlu0 %1671
    %v1674 = vsel %vm332, %v1165, %v1664
    %v1675 = vsel %vm74, %v1674, %v1668
    %v1676 = vsel %vm1004, %v1675, %v1672
    %v1677 = vld [vmem:[%s6] sm:$0xff]
    %v1678 = vld [vmem:[%s6 + $0x8] sm:$0xff]
    %v1679 = vld [vmem:[%s6 + $0x10] sm:$0xff]
    %v1680 = vld [vmem:[%s6 + $0x18] sm:$0xff]
    %v1681 = vld [vmem:[%s6 + $0x20] sm:$0xff]
    %v1682 = vld [vmem:[%s6 + $0x28] sm:$0xff]
    %v1683 = vld [vmem:[%s6 + $0x30] sm:$0xff]
    %v1684 = vld [vmem:[%s6 + $0x38] sm:$0xff]
    %vm1685 = vcmask 523264
    %v1687 = vsel %vm1685, %v1005, 0
    %v1690 = vsel %vm1685, %v1676, 0
    %1692 = vmatprep.subr.mxu0 0.0
    %1693 = vmatpush1.msra.mxu0 %v1677
    %1694 = vmatprep.subr.mxu0 0.0
    %1695 = vmatpush1.msra.mxu0 %v1678
    %1696 = vmatprep.subr.mxu0 0.0
    %1697 = vmatpush1.msra.mxu0 %v1679
    %1698 = vmatprep.subr.mxu0 0.0
    %1699 = vmatpush1.msra.mxu0 %v1680
    %1700 = vmatprep.subr.mxu0 0.0
    %1701 = vmatpush1.msra.mxu0 %v1681
    %1702 = vmatprep.subr.mxu0 0.0
    %1703 = vmatpush1.msra.mxu0 %v1682
    %1704 = vmatprep.subr.mxu0 0.0
    %1705 = vmatpush1.msra.mxu0 %v1683
    %1706 = vmatprep.subr.mxu0 0.0
    %1707 = vmatpush1.msra.mxu0 %v1684
    %1708 = vmatprep.subr.mxu0 0.0
    %1709 = vmatpush1.msra.mxu0 0.0
    %1710 = vmatprep.subr.mxu0 0.0
    %1711 = vmatpush1.msra.mxu0 0.0
    %1712 = vmatprep.subr.mxu0 0.0
    %1713 = vmatpush1.msra.mxu0 0.0
    %1714 = vmatprep.subr.mxu0 0.0
    %1715 = vmatpush1.msra.mxu0 0.0
    %1716 = vmatprep.subr.mxu0 0.0
    %1717 = vmatpush1.msra.mxu0 0.0
    %1718 = vmatprep.subr.mxu0 0.0
    %1719 = vmatpush1.msra.mxu0 0.0
    %1720 = vmatprep.subr.mxu0 0.0
    %1721 = vmatpush1.msra.mxu0 0.0
    %1722 = vmatprep.subr.mxu0 0.0
    %1723 = vmatpush1.msra.mxu0 0.0
    %1724 = vmatprep.subr.mxu0 0.0
    %1725 = vmatpush1.msra.mxu0 0.0
    %1726 = vmatprep.subr.mxu0 0.0
    %1727 = vmatpush1.msra.mxu0 0.0
    %1728 = vmatprep.subr.mxu0 0.0
    %1729 = vmatpush1.msra.mxu0 0.0
    %1730 = vmatprep.subr.mxu0 0.0
    %1731 = vmatpush1.msra.mxu0 0.0
    %1732 = vmatprep.subr.mxu0 0.0
    %1733 = vmatpush1.msra.mxu0 0.0
    %1734 = vmatprep.subr.mxu0 0.0
    %1735 = vmatpush1.msra.mxu0 0.0
    %1736 = vmatprep.subr.mxu0 0.0
    %1737 = vmatpush1.msra.mxu0 0.0
    %1738 = vmatprep.subr.mxu0 0.0
    %1739 = vmatpush1.msra.mxu0 0.0
    %1740 = vmatprep.subr.mxu0 0.0
    %1741 = vmatpush1.msra.mxu0 0.0
    %1742 = vmatprep.subr.mxu0 0.0
    %1743 = vmatpush1.msra.mxu0 0.0
    %1744 = vmatprep.subr.mxu0 0.0
    %1745 = vmatpush1.msra.mxu0 0.0
    %1746 = vmatprep.subr.mxu0 0.0
    %1747 = vmatpush1.msra.mxu0 0.0
    %1748 = vmatprep.subr.mxu0 0.0
    %1749 = vmatpush1.msra.mxu0 0.0
    %1750 = vmatprep.subr.mxu0 0.0
    %1751 = vmatpush1.msra.mxu0 0.0
    %1752 = vmatprep.subr.mxu0 0.0
    %1753 = vmatpush1.msra.mxu0 0.0
    %1754 = vmatprep.subr.mxu0 0.0
    %1755 = vmatpush1.msra.mxu0 0.0
    %1756 = vmatprep.mubr.f32.mxu0 0.0
    %1757 = vmatmul.mubr.f32.gmra.mrb[0].mxu0 %v1687
    %v1758 = vpop.f32.mrb[0].mxu0
    %v1759 = vadd.f32 0.0, %v1758
    %v1760 = vpop.f32.mrb[0].mxu0
    %1761 = vmatprep.mubr.f32.mxu0 0.0
    %1762 = vmatmul.mubr.f32.gmra.mrb[0].mxu0 %v1690
    %v1763 = vpop.f32.mrb[0].mxu0
    %v1764 = vadd.f32 0.0, %v1763
    %v1765 = vpop.f32.mrb[0].mxu0
    %1766 = vdwg.mxu0
    %1767 = vst.msk [vmem:[#allocation8] sm:$0xff] %vm74, %v1759
    %1768 = vst.msk [vmem:[#allocation8 + $0x8] sm:$0xff] %vm74, %v1764
    // Predicated region
    $region42: #{tpu_custom_call.1} parent=1 // pred_check
      _
    $region43: #{tpu_custom_call.1} parent=1 // pred_check_branch
      %1770 = sbr.rel (0) target = $region45
    $region44: #{tpu_custom_call.1} parent=1 // pred_region
      %s1772 = ssub.s32 256, 256
      %1773 = vsyncadd [#allocation4], %s1772
      %s1774 = sshll.u32 [#allocation8], 4
      %s1775 = int_to_ptr.vmem [resolvable:$true] %s1774
      %1780 = dma.vmem_to_hbm [thread:$0]  %s1775, 256, %s7, [#allocation4], 128, 128, 8
    $region45: #{tpu_custom_call.1} parent=1 // pred_fallthru
      _
    // Predicated region
    $region46: #{tpu_custom_call.1} parent=1 // pred_check
      _
    $region47: #{tpu_custom_call.1} parent=1 // pred_check_branch
      %1782 = sbr.rel (0) target = $region49
    $region48: #{tpu_custom_call.1} parent=1 // pred_region
      %1783 = dma.done [#allocation4], 256
    $region49: #{tpu_custom_call.1} parent=1 // pred_fallthru
      _
    %1784 = vsyncpa [#allocation3], 1
    %1785 = vsyncpa [#allocation6], 1
    %1786 = vsyncpa [#allocation4], 1

</llo_original>
